<compile_context>
chip_gen: v7x
topology: tpu7x:2x2x1
jax: 0.10.0
libtpu: 0.0.40
codegen_flags: <defaults>
</compile_context>

<pallas_src>
import functools
import math

import jax
import jax.numpy as jnp
from jax import lax
from jax.experimental import pallas as pl
from jax.experimental.pallas import tpu as pltpu

# Default MXU precision (matches previously validated build).  Flip to
# lax.Precision.HIGHEST for maximum f32 parity with PyTorch at a small MXU-pass cost.
_MM_PRECISION = None


# ----------------------------------------------------------------------------
# Fused kernel: GRU stack + BatchNorm + ReLU + merged heads, single call, no grid.
# ----------------------------------------------------------------------------
def _fused_rnn_kernel(num_layers, *refs):
    # ---- unpack (inputs..., output, scratch) ----
    idx = 0
    x_ref = refs[idx]; idx += 1                       # (T*B, D)  time-major rows
    layers = []
    for _ in range(num_layers):
        w_ih_ref = refs[idx]; idx += 1                # (in, 3H)  columns [r|z|n]
        b_ref = refs[idx]; idx += 1                   # (1, 3H)   r,z cols incl. b_hh
        w_hh_ref = refs[idx]; idx += 1                # (H, 3H)   columns [r|z|n]
        b_hn_ref = refs[idx]; idx += 1                # (1, H)
        layers.append((w_ih_ref, b_ref, w_hh_ref, b_hn_ref))
    gamma_ref = refs[idx]; idx += 1                   # (1, H)
    beta_ref = refs[idx]; idx += 1                    # (1, H)
    w_head_ref = refs[idx]; idx += 1                  # (H, 3)  [x|y|z]
    b_head_ref = refs[idx]; idx += 1                  # (1, 3)
    o_ref = refs[idx]; idx += 1                       # (B, 3)  output
    h_buf = refs[idx]; idx += 1                       # (T*B, H) inter-layer handoff scratch
    assert idx == len(refs)

    B = o_ref.shape[0]
    H = gamma_ref.shape[1]
    TB = x_ref.shape[0]
    T = TB // B

    def mm(a, w):
        return jnp.dot(a, w, preferred_element_type=jnp.float32,
                       precision=_MM_PRECISION)

    h_last = None
    for l, (w_ih_ref, b_ref, w_hh_ref, b_hn_ref) in enumerate(layers):
        # ---- hoisted input projection for ALL timesteps: ONE MXU matmul, kept in vregs ----
        src = x_ref if l == 0 else h_buf
        gx = mm(src[...], w_ih_ref[...]) + b_ref[...]            # (T*B, 3H)

        w_hh = w_hh_ref[...]                                     # load once per layer
        b_hn = jnp.broadcast_to(b_hn_ref[...], (B, H))           # hoisted broadcast
        keep_seq = (l + 1 < num_layers)                          # next layer needs h_t

        # ---- fully unrolled recurrence: one (B,H)x(H,3H) matmul per step on the chain ----
        h = jnp.zeros((B, H), jnp.float32)
        for t in range(T):
            gx_t = gx[t * B:(t + 1) * B, :]                      # (B, 3H) static slice
            gh = mm(h, w_hh)                                     # (B, 3H) fused-gate matmul
            rz = lax.logistic(gx_t[:, :2 * H] + gh[:, :2 * H])   # batched sigmoid for [r|z]
            r = rz[:, :H]
            z = rz[:, H:]
            n = jnp.tanh(gx_t[:, 2 * H:] + r * (gh[:, 2 * H:] + b_hn))
            h = (1.0 - z) * n + z * h
            if keep_seq:
                h_buf[pl.ds(t * B, B), :] = h                    # feed next layer's hoist
        h_last = h

    # ---- BatchNorm1d (training-mode batch stats, biased var) + ReLU + merged heads ----
    f = h_last                                                   # == out[:, -1, :]
    mean = jnp.mean(f, axis=0, keepdims=True)
    var = jnp.mean((f - mean) ** 2, axis=0, keepdims=True)
    y = (f - mean) * lax.rsqrt(var + 1e-5)
    y = y * gamma_ref[...] + beta_ref[...]
    y = jnp.maximum(y, 0.0)                                      # ReLU
    o_ref[...] = mm(y, w_head_ref[...]) + b_head_ref[...]        # (B, 3) = [x | y | z]


# ----------------------------------------------------------------------------
# Wrapper: folds/packs parameters, runs the single fused pallas_call.
# ----------------------------------------------------------------------------
def rnn_forward(x_btd, params):
    """x_btd: (B, T, 310) float32 -> (outx, outy, outz), each (B, 1)."""
    B, T, D = x_btd.shape
    gru = params["gru"]
    L = len(gru)
    H = gru[0]["w_hh"].shape[0]

    # time-major rows: row t*B + b == (batch b, step t).  ~20 KB transpose; kept in the
    # wrapper so every in-kernel per-step slice is a simple contiguous 2-row window.
    x_tb = jnp.transpose(x_btd, (1, 0, 2)).reshape(T * B, D)

    # Packed per-layer params: W_ih (in,3H), folded bias (1,3H) (b_ih+b_hh for r,z; b_ih for n),
    # W_hh (H,3H), b_hn (1,H).
    args = [x_tb]
    for ly in gru:
        b_fold = jnp.concatenate(
            [ly["b_ih"][:, :2 * H] + ly["b_hh"][:, :2 * H], ly["b_ih"][:, 2 * H:]], axis=1)
        args += [ly["w_ih"], b_fold, ly["w_hh"], ly["b_hh"][:, 2 * H:]]

    w_head = jnp.concatenate([params["wx"], params["wy"], params["wz"]], axis=1)   # (H, 3)
    b_head = jnp.concatenate([params["bx"], params["by"], params["bz"]], axis=1)   # (1, 3)
    args += [params["bn_gamma"], params["bn_beta"], w_head, b_head]

    vmem_spec = pl.BlockSpec(memory_space=pltpu.MemorySpace.VMEM)
    out = pl.pallas_call(
        functools.partial(_fused_rnn_kernel, L),
        out_shape=jax.ShapeDtypeStruct((B, 3), jnp.float32),
        in_specs=[vmem_spec] * len(args),
        out_specs=vmem_spec,
        scratch_shapes=[pltpu.VMEM((T * B, H), jnp.float32)],   # inter-layer handoff buffer
    )(*args)
    return out[:, 0:1], out[:, 1:2], out[:, 2:3]


# ----------------------------------------------------------------------------
# Parameter init (PyTorch layout, transposed: (in, 3H) columns = [r|z|n])
# ----------------------------------------------------------------------------
def init_params(key, input_size=310, hidden_size=32, num_layers=2):
    k = 1.0 / math.sqrt(hidden_size)
    params = {"gru": []}
    keys = jax.random.split(key, 4 * num_layers + 8)
    idx = 0
    for layer in range(num_layers):
        in_dim = input_size if layer == 0 else hidden_size
        w_ih = jax.random.uniform(keys[idx], (in_dim, 3 * hidden_size),
                                  minval=-k, maxval=k, dtype=jnp.float32); idx += 1
        w_hh = jax.random.uniform(keys[idx], (hidden_size, 3 * hidden_size),
                                  minval=-k, maxval=k, dtype=jnp.float32); idx += 1
        b_ih = jax.random.uniform(keys[idx], (1, 3 * hidden_size),
                                  minval=-k, maxval=k, dtype=jnp.float32); idx += 1
        b_hh = jax.random.uniform(keys[idx], (1, 3 * hidden_size),
                                  minval=-k, maxval=k, dtype=jnp.float32); idx += 1
        params["gru"].append({"w_ih": w_ih, "w_hh": w_hh, "b_ih": b_ih, "b_hh": b_hh})

    params["bn_gamma"] = jnp.ones((1, hidden_size), jnp.float32)
    params["bn_beta"] = jnp.zeros((1, hidden_size), jnp.float32)

    kl = 1.0 / math.sqrt(hidden_size)
    for name in ("x", "y", "z"):
        params["w" + name] = jax.random.uniform(keys[idx], (hidden_size, 1),
                                                minval=-kl, maxval=kl, dtype=jnp.float32); idx += 1
        params["b" + name] = jax.random.uniform(keys[idx], (1, 1),
                                                minval=-kl, maxval=kl, dtype=jnp.float32); idx += 1
    return params


if __name__ == "__main__":
    B, T, D = 2, 8, 310
    hidden_size, num_layers = 32, 2

    key = jax.random.PRNGKey(0)
    k_x, k_p = jax.random.split(key)
    x = jax.random.normal(k_x, (B, T, D), dtype=jnp.float32)
    params = init_params(k_p, input_size=D, hidden_size=hidden_size, num_layers=num_layers)

    outx, outy, outz = jax.jit(rnn_forward)(x, params)
    jax.block_until_ready((outx, outy, outz))
    assert outx.shape == (B, 1) and outy.shape == (B, 1) and outz.shape == (B, 1)
    print("KERNEL_OK")
</pallas_src>

<mosaic_0001>
module attributes {stable_mosaic.version = 11 : i64} {
  func.func @_fused_rnn_kernel(%arg0: memref<16x310xf32, #tpu.memory_space<vmem>>, %arg1: memref<310x96xf32, #tpu.memory_space<vmem>>, %arg2: memref<1x96xf32, #tpu.memory_space<vmem>>, %arg3: memref<32x96xf32, #tpu.memory_space<vmem>>, %arg4: memref<1x32xf32, #tpu.memory_space<vmem>>, %arg5: memref<32x96xf32, #tpu.memory_space<vmem>>, %arg6: memref<1x96xf32, #tpu.memory_space<vmem>>, %arg7: memref<32x96xf32, #tpu.memory_space<vmem>>, %arg8: memref<1x32xf32, #tpu.memory_space<vmem>>, %arg9: memref<1x32xf32, #tpu.memory_space<vmem>>, %arg10: memref<1x32xf32, #tpu.memory_space<vmem>>, %arg11: memref<32x3xf32, #tpu.memory_space<vmem>>, %arg12: memref<1x3xf32, #tpu.memory_space<vmem>>, %arg13: memref<2x3xf32, #tpu.memory_space<vmem>>, %arg14: memref<16x32xf32, #tpu.memory_space<vmem>>) attributes {dimension_semantics = [], scalar_prefetch = 0 : i64, scratch_operands = 1 : i64, tpu.core_type = #tpu.core_type<tc>} {
    %c0 = arith.constant 0 : index
    %c0_0 = arith.constant 0 : index
    %0 = vector.load %arg0[%c0, %c0_0] : memref<16x310xf32, #tpu.memory_space<vmem>>, vector<16x310xf32>
    %c0_1 = arith.constant 0 : index
    %c0_2 = arith.constant 0 : index
    %1 = vector.load %arg1[%c0_1, %c0_2] : memref<310x96xf32, #tpu.memory_space<vmem>>, vector<310x96xf32>
    %cst = arith.constant dense<0.000000e+00> : vector<16x96xf32>
    %2 = tpu.matmul %0, %1, %cst {dimension_numbers = #tpu.dot_dimension_numbers<[1], [0], [0], [1], [0, 0, 1, 1], [], []>} : vector<16x310xf32>, vector<310x96xf32>, vector<16x96xf32> -> vector<16x96xf32>
    %c0_3 = arith.constant 0 : index
    %c0_4 = arith.constant 0 : index
    %3 = vector.load %arg2[%c0_3, %c0_4] : memref<1x96xf32, #tpu.memory_space<vmem>>, vector<1x96xf32>
    %4 = vector.broadcast %3 : vector<1x96xf32> to vector<16x96xf32>
    %5 = arith.addf %2, %4 : vector<16x96xf32>
    %c0_5 = arith.constant 0 : index
    %c0_6 = arith.constant 0 : index
    %6 = vector.load %arg3[%c0_5, %c0_6] : memref<32x96xf32, #tpu.memory_space<vmem>>, vector<32x96xf32>
    %c0_7 = arith.constant 0 : index
    %c0_8 = arith.constant 0 : index
    %7 = vector.load %arg4[%c0_7, %c0_8] : memref<1x32xf32, #tpu.memory_space<vmem>>, vector<1x32xf32>
    %8 = vector.shape_cast %7 : vector<1x32xf32> to vector<1x32xf32>
    %9 = vector.broadcast %8 : vector<1x32xf32> to vector<2x32xf32>
    %cst_9 = arith.constant 0.000000e+00 : f32
    %10 = vector.broadcast %cst_9 : f32 to vector<2x32xf32>
    %11 = vector.extract_strided_slice %5 {offsets = [0, 0], sizes = [2, 96], strides = [1, 1]} : vector<16x96xf32> to vector<2x96xf32>
    %cst_10 = arith.constant dense<0.000000e+00> : vector<2x96xf32>
    %12 = tpu.matmul %10, %6, %cst_10 {dimension_numbers = #tpu.dot_dimension_numbers<[1], [0], [0], [1], [0, 0, 1, 1], [], []>} : vector<2x32xf32>, vector<32x96xf32>, vector<2x96xf32> -> vector<2x96xf32>
    %13 = vector.extract_strided_slice %11 {offsets = [0, 0], sizes = [2, 64], strides = [1, 1]} : vector<2x96xf32> to vector<2x64xf32>
    %14 = vector.extract_strided_slice %12 {offsets = [0, 0], sizes = [2, 64], strides = [1, 1]} : vector<2x96xf32> to vector<2x64xf32>
    %15 = arith.addf %13, %14 : vector<2x64xf32>
    %16 = arith.negf %15 : vector<2x64xf32>
    %17 = math.exp %16 : vector<2x64xf32>
    %cst_11 = arith.constant 1.000000e+00 : f32
    %18 = vector.broadcast %cst_11 : f32 to vector<2x64xf32>
    %19 = arith.addf %18, %17 : vector<2x64xf32>
    %20 = arith.divf %18, %19 : vector<2x64xf32>
    %21 = vector.extract_strided_slice %20 {offsets = [0, 0], sizes = [2, 32], strides = [1, 1]} : vector<2x64xf32> to vector<2x32xf32>
    %22 = vector.extract_strided_slice %20 {offsets = [0, 32], sizes = [2, 32], strides = [1, 1]} : vector<2x64xf32> to vector<2x32xf32>
    %23 = vector.extract_strided_slice %11 {offsets = [0, 64], sizes = [2, 32], strides = [1, 1]} : vector<2x96xf32> to vector<2x32xf32>
    %24 = vector.extract_strided_slice %12 {offsets = [0, 64], sizes = [2, 32], strides = [1, 1]} : vector<2x96xf32> to vector<2x32xf32>
    %25 = arith.addf %24, %9 : vector<2x32xf32>
    %26 = arith.mulf %21, %25 : vector<2x32xf32>
    %27 = arith.addf %23, %26 : vector<2x32xf32>
    %28 = math.tanh %27 : vector<2x32xf32>
    %cst_12 = arith.constant 1.000000e+00 : f32
    %29 = vector.broadcast %cst_12 : f32 to vector<2x32xf32>
    %30 = arith.subf %29, %22 : vector<2x32xf32>
    %31 = arith.mulf %30, %28 : vector<2x32xf32>
    %32 = arith.mulf %22, %10 : vector<2x32xf32>
    %33 = arith.addf %31, %32 : vector<2x32xf32>
    %c0_13 = arith.constant 0 : index
    %c0_14 = arith.constant 0 : index
    %34 = vector.load %arg14[%c0_13, %c0_14] : memref<16x32xf32, #tpu.memory_space<vmem>>, vector<2x32xf32>
    tpu.vector_store %arg14[%c0_13, %c0_14], %33 {strides = array<i32>} : memref<16x32xf32, #tpu.memory_space<vmem>>, vector<2x32xf32>,
    %35 = vector.extract_strided_slice %5 {offsets = [2, 0], sizes = [2, 96], strides = [1, 1]} : vector<16x96xf32> to vector<2x96xf32>
    %cst_15 = arith.constant dense<0.000000e+00> : vector<2x96xf32>
    %36 = tpu.matmul %33, %6, %cst_15 {dimension_numbers = #tpu.dot_dimension_numbers<[1], [0], [0], [1], [0, 0, 1, 1], [], []>} : vector<2x32xf32>, vector<32x96xf32>, vector<2x96xf32> -> vector<2x96xf32>
    %37 = vector.extract_strided_slice %35 {offsets = [0, 0], sizes = [2, 64], strides = [1, 1]} : vector<2x96xf32> to vector<2x64xf32>
    %38 = vector.extract_strided_slice %36 {offsets = [0, 0], sizes = [2, 64], strides = [1, 1]} : vector<2x96xf32> to vector<2x64xf32>
    %39 = arith.addf %37, %38 : vector<2x64xf32>
    %40 = arith.negf %39 : vector<2x64xf32>
    %41 = math.exp %40 : vector<2x64xf32>
    %cst_16 = arith.constant 1.000000e+00 : f32
    %42 = vector.broadcast %cst_16 : f32 to vector<2x64xf32>
    %43 = arith.addf %42, %41 : vector<2x64xf32>
    %44 = arith.divf %42, %43 : vector<2x64xf32>
    %45 = vector.extract_strided_slice %44 {offsets = [0, 0], sizes = [2, 32], strides = [1, 1]} : vector<2x64xf32> to vector<2x32xf32>
    %46 = vector.extract_strided_slice %44 {offsets = [0, 32], sizes = [2, 32], strides = [1, 1]} : vector<2x64xf32> to vector<2x32xf32>
    %47 = vector.extract_strided_slice %35 {offsets = [0, 64], sizes = [2, 32], strides = [1, 1]} : vector<2x96xf32> to vector<2x32xf32>
    %48 = vector.extract_strided_slice %36 {offsets = [0, 64], sizes = [2, 32], strides = [1, 1]} : vector<2x96xf32> to vector<2x32xf32>
    %49 = arith.addf %48, %9 : vector<2x32xf32>
    %50 = arith.mulf %45, %49 : vector<2x32xf32>
    %51 = arith.addf %47, %50 : vector<2x32xf32>
    %52 = math.tanh %51 : vector<2x32xf32>
    %cst_17 = arith.constant 1.000000e+00 : f32
    %53 = vector.broadcast %cst_17 : f32 to vector<2x32xf32>
    %54 = arith.subf %53, %46 : vector<2x32xf32>
    %55 = arith.mulf %54, %52 : vector<2x32xf32>
    %56 = arith.mulf %46, %33 : vector<2x32xf32>
    %57 = arith.addf %55, %56 : vector<2x32xf32>
    %c2 = arith.constant 2 : index
    %c0_18 = arith.constant 0 : index
    %58 = vector.load %arg14[%c2, %c0_18] : memref<16x32xf32, #tpu.memory_space<vmem>>, vector<2x32xf32>
    tpu.vector_store %arg14[%c2, %c0_18], %57 {strides = array<i32>} : memref<16x32xf32, #tpu.memory_space<vmem>>, vector<2x32xf32>,
    %59 = vector.extract_strided_slice %5 {offsets = [4, 0], sizes = [2, 96], strides = [1, 1]} : vector<16x96xf32> to vector<2x96xf32>
    %cst_19 = arith.constant dense<0.000000e+00> : vector<2x96xf32>
    %60 = tpu.matmul %57, %6, %cst_19 {dimension_numbers = #tpu.dot_dimension_numbers<[1], [0], [0], [1], [0, 0, 1, 1], [], []>} : vector<2x32xf32>, vector<32x96xf32>, vector<2x96xf32> -> vector<2x96xf32>
    %61 = vector.extract_strided_slice %59 {offsets = [0, 0], sizes = [2, 64], strides = [1, 1]} : vector<2x96xf32> to vector<2x64xf32>
    %62 = vector.extract_strided_slice %60 {offsets = [0, 0], sizes = [2, 64], strides = [1, 1]} : vector<2x96xf32> to vector<2x64xf32>
    %63 = arith.addf %61, %62 : vector<2x64xf32>
    %64 = arith.negf %63 : vector<2x64xf32>
    %65 = math.exp %64 : vector<2x64xf32>
    %cst_20 = arith.constant 1.000000e+00 : f32
    %66 = vector.broadcast %cst_20 : f32 to vector<2x64xf32>
    %67 = arith.addf %66, %65 : vector<2x64xf32>
    %68 = arith.divf %66, %67 : vector<2x64xf32>
    %69 = vector.extract_strided_slice %68 {offsets = [0, 0], sizes = [2, 32], strides = [1, 1]} : vector<2x64xf32> to vector<2x32xf32>
    %70 = vector.extract_strided_slice %68 {offsets = [0, 32], sizes = [2, 32], strides = [1, 1]} : vector<2x64xf32> to vector<2x32xf32>
    %71 = vector.extract_strided_slice %59 {offsets = [0, 64], sizes = [2, 32], strides = [1, 1]} : vector<2x96xf32> to vector<2x32xf32>
    %72 = vector.extract_strided_slice %60 {offsets = [0, 64], sizes = [2, 32], strides = [1, 1]} : vector<2x96xf32> to vector<2x32xf32>
    %73 = arith.addf %72, %9 : vector<2x32xf32>
    %74 = arith.mulf %69, %73 : vector<2x32xf32>
    %75 = arith.addf %71, %74 : vector<2x32xf32>
    %76 = math.tanh %75 : vector<2x32xf32>
    %cst_21 = arith.constant 1.000000e+00 : f32
    %77 = vector.broadcast %cst_21 : f32 to vector<2x32xf32>
    %78 = arith.subf %77, %70 : vector<2x32xf32>
    %79 = arith.mulf %78, %76 : vector<2x32xf32>
    %80 = arith.mulf %70, %57 : vector<2x32xf32>
    %81 = arith.addf %79, %80 : vector<2x32xf32>
    %c4 = arith.constant 4 : index
    %c0_22 = arith.constant 0 : index
    %82 = vector.load %arg14[%c4, %c0_22] : memref<16x32xf32, #tpu.memory_space<vmem>>, vector<2x32xf32>
    tpu.vector_store %arg14[%c4, %c0_22], %81 {strides = array<i32>} : memref<16x32xf32, #tpu.memory_space<vmem>>, vector<2x32xf32>,
    %83 = vector.extract_strided_slice %5 {offsets = [6, 0], sizes = [2, 96], strides = [1, 1]} : vector<16x96xf32> to vector<2x96xf32>
    %cst_23 = arith.constant dense<0.000000e+00> : vector<2x96xf32>
    %84 = tpu.matmul %81, %6, %cst_23 {dimension_numbers = #tpu.dot_dimension_numbers<[1], [0], [0], [1], [0, 0, 1, 1], [], []>} : vector<2x32xf32>, vector<32x96xf32>, vector<2x96xf32> -> vector<2x96xf32>
    %85 = vector.extract_strided_slice %83 {offsets = [0, 0], sizes = [2, 64], strides = [1, 1]} : vector<2x96xf32> to vector<2x64xf32>
    %86 = vector.extract_strided_slice %84 {offsets = [0, 0], sizes = [2, 64], strides = [1, 1]} : vector<2x96xf32> to vector<2x64xf32>
    %87 = arith.addf %85, %86 : vector<2x64xf32>
    %88 = arith.negf %87 : vector<2x64xf32>
    %89 = math.exp %88 : vector<2x64xf32>
    %cst_24 = arith.constant 1.000000e+00 : f32
    %90 = vector.broadcast %cst_24 : f32 to vector<2x64xf32>
    %91 = arith.addf %90, %89 : vector<2x64xf32>
    %92 = arith.divf %90, %91 : vector<2x64xf32>
    %93 = vector.extract_strided_slice %92 {offsets = [0, 0], sizes = [2, 32], strides = [1, 1]} : vector<2x64xf32> to vector<2x32xf32>
    %94 = vector.extract_strided_slice %92 {offsets = [0, 32], sizes = [2, 32], strides = [1, 1]} : vector<2x64xf32> to vector<2x32xf32>
    %95 = vector.extract_strided_slice %83 {offsets = [0, 64], sizes = [2, 32], strides = [1, 1]} : vector<2x96xf32> to vector<2x32xf32>
    %96 = vector.extract_strided_slice %84 {offsets = [0, 64], sizes = [2, 32], strides = [1, 1]} : vector<2x96xf32> to vector<2x32xf32>
    %97 = arith.addf %96, %9 : vector<2x32xf32>
    %98 = arith.mulf %93, %97 : vector<2x32xf32>
    %99 = arith.addf %95, %98 : vector<2x32xf32>
    %100 = math.tanh %99 : vector<2x32xf32>
    %cst_25 = arith.constant 1.000000e+00 : f32
    %101 = vector.broadcast %cst_25 : f32 to vector<2x32xf32>
    %102 = arith.subf %101, %94 : vector<2x32xf32>
    %103 = arith.mulf %102, %100 : vector<2x32xf32>
    %104 = arith.mulf %94, %81 : vector<2x32xf32>
    %105 = arith.addf %103, %104 : vector<2x32xf32>
    %c6 = arith.constant 6 : index
    %c0_26 = arith.constant 0 : index
    %106 = vector.load %arg14[%c6, %c0_26] : memref<16x32xf32, #tpu.memory_space<vmem>>, vector<2x32xf32>
    tpu.vector_store %arg14[%c6, %c0_26], %105 {strides = array<i32>} : memref<16x32xf32, #tpu.memory_space<vmem>>, vector<2x32xf32>,
    %107 = vector.extract_strided_slice %5 {offsets = [8, 0], sizes = [2, 96], strides = [1, 1]} : vector<16x96xf32> to vector<2x96xf32>
    %cst_27 = arith.constant dense<0.000000e+00> : vector<2x96xf32>
    %108 = tpu.matmul %105, %6, %cst_27 {dimension_numbers = #tpu.dot_dimension_numbers<[1], [0], [0], [1], [0, 0, 1, 1], [], []>} : vector<2x32xf32>, vector<32x96xf32>, vector<2x96xf32> -> vector<2x96xf32>
    %109 = vector.extract_strided_slice %107 {offsets = [0, 0], sizes = [2, 64], strides = [1, 1]} : vector<2x96xf32> to vector<2x64xf32>
    %110 = vector.extract_strided_slice %108 {offsets = [0, 0], sizes = [2, 64], strides = [1, 1]} : vector<2x96xf32> to vector<2x64xf32>
    %111 = arith.addf %109, %110 : vector<2x64xf32>
    %112 = arith.negf %111 : vector<2x64xf32>
    %113 = math.exp %112 : vector<2x64xf32>
    %cst_28 = arith.constant 1.000000e+00 : f32
    %114 = vector.broadcast %cst_28 : f32 to vector<2x64xf32>
    %115 = arith.addf %114, %113 : vector<2x64xf32>
    %116 = arith.divf %114, %115 : vector<2x64xf32>
    %117 = vector.extract_strided_slice %116 {offsets = [0, 0], sizes = [2, 32], strides = [1, 1]} : vector<2x64xf32> to vector<2x32xf32>
    %118 = vector.extract_strided_slice %116 {offsets = [0, 32], sizes = [2, 32], strides = [1, 1]} : vector<2x64xf32> to vector<2x32xf32>
    %119 = vector.extract_strided_slice %107 {offsets = [0, 64], sizes = [2, 32], strides = [1, 1]} : vector<2x96xf32> to vector<2x32xf32>
    %120 = vector.extract_strided_slice %108 {offsets = [0, 64], sizes = [2, 32], strides = [1, 1]} : vector<2x96xf32> to vector<2x32xf32>
    %121 = arith.addf %120, %9 : vector<2x32xf32>
    %122 = arith.mulf %117, %121 : vector<2x32xf32>
    %123 = arith.addf %119, %122 : vector<2x32xf32>
    %124 = math.tanh %123 : vector<2x32xf32>
    %cst_29 = arith.constant 1.000000e+00 : f32
    %125 = vector.broadcast %cst_29 : f32 to vector<2x32xf32>
    %126 = arith.subf %125, %118 : vector<2x32xf32>
    %127 = arith.mulf %126, %124 : vector<2x32xf32>
    %128 = arith.mulf %118, %105 : vector<2x32xf32>
    %129 = arith.addf %127, %128 : vector<2x32xf32>
    %c8 = arith.constant 8 : index
    %c0_30 = arith.constant 0 : index
    %130 = vector.load %arg14[%c8, %c0_30] : memref<16x32xf32, #tpu.memory_space<vmem>>, vector<2x32xf32>
    tpu.vector_store %arg14[%c8, %c0_30], %129 {strides = array<i32>} : memref<16x32xf32, #tpu.memory_space<vmem>>, vector<2x32xf32>,
    %131 = vector.extract_strided_slice %5 {offsets = [10, 0], sizes = [2, 96], strides = [1, 1]} : vector<16x96xf32> to vector<2x96xf32>
    %cst_31 = arith.constant dense<0.000000e+00> : vector<2x96xf32>
    %132 = tpu.matmul %129, %6, %cst_31 {dimension_numbers = #tpu.dot_dimension_numbers<[1], [0], [0], [1], [0, 0, 1, 1], [], []>} : vector<2x32xf32>, vector<32x96xf32>, vector<2x96xf32> -> vector<2x96xf32>
    %133 = vector.extract_strided_slice %131 {offsets = [0, 0], sizes = [2, 64], strides = [1, 1]} : vector<2x96xf32> to vector<2x64xf32>
    %134 = vector.extract_strided_slice %132 {offsets = [0, 0], sizes = [2, 64], strides = [1, 1]} : vector<2x96xf32> to vector<2x64xf32>
    %135 = arith.addf %133, %134 : vector<2x64xf32>
    %136 = arith.negf %135 : vector<2x64xf32>
    %137 = math.exp %136 : vector<2x64xf32>
    %cst_32 = arith.constant 1.000000e+00 : f32
    %138 = vector.broadcast %cst_32 : f32 to vector<2x64xf32>
    %139 = arith.addf %138, %137 : vector<2x64xf32>
    %140 = arith.divf %138, %139 : vector<2x64xf32>
    %141 = vector.extract_strided_slice %140 {offsets = [0, 0], sizes = [2, 32], strides = [1, 1]} : vector<2x64xf32> to vector<2x32xf32>
    %142 = vector.extract_strided_slice %140 {offsets = [0, 32], sizes = [2, 32], strides = [1, 1]} : vector<2x64xf32> to vector<2x32xf32>
    %143 = vector.extract_strided_slice %131 {offsets = [0, 64], sizes = [2, 32], strides = [1, 1]} : vector<2x96xf32> to vector<2x32xf32>
    %144 = vector.extract_strided_slice %132 {offsets = [0, 64], sizes = [2, 32], strides = [1, 1]} : vector<2x96xf32> to vector<2x32xf32>
    %145 = arith.addf %144, %9 : vector<2x32xf32>
    %146 = arith.mulf %141, %145 : vector<2x32xf32>
    %147 = arith.addf %143, %146 : vector<2x32xf32>
    %148 = math.tanh %147 : vector<2x32xf32>
    %cst_33 = arith.constant 1.000000e+00 : f32
    %149 = vector.broadcast %cst_33 : f32 to vector<2x32xf32>
    %150 = arith.subf %149, %142 : vector<2x32xf32>
    %151 = arith.mulf %150, %148 : vector<2x32xf32>
    %152 = arith.mulf %142, %129 : vector<2x32xf32>
    %153 = arith.addf %151, %152 : vector<2x32xf32>
    %c10 = arith.constant 10 : index
    %c0_34 = arith.constant 0 : index
    %154 = vector.load %arg14[%c10, %c0_34] : memref<16x32xf32, #tpu.memory_space<vmem>>, vector<2x32xf32>
    tpu.vector_store %arg14[%c10, %c0_34], %153 {strides = array<i32>} : memref<16x32xf32, #tpu.memory_space<vmem>>, vector<2x32xf32>,
    %155 = vector.extract_strided_slice %5 {offsets = [12, 0], sizes = [2, 96], strides = [1, 1]} : vector<16x96xf32> to vector<2x96xf32>
    %cst_35 = arith.constant dense<0.000000e+00> : vector<2x96xf32>
    %156 = tpu.matmul %153, %6, %cst_35 {dimension_numbers = #tpu.dot_dimension_numbers<[1], [0], [0], [1], [0, 0, 1, 1], [], []>} : vector<2x32xf32>, vector<32x96xf32>, vector<2x96xf32> -> vector<2x96xf32>
    %157 = vector.extract_strided_slice %155 {offsets = [0, 0], sizes = [2, 64], strides = [1, 1]} : vector<2x96xf32> to vector<2x64xf32>
    %158 = vector.extract_strided_slice %156 {offsets = [0, 0], sizes = [2, 64], strides = [1, 1]} : vector<2x96xf32> to vector<2x64xf32>
    %159 = arith.addf %157, %158 : vector<2x64xf32>
    %160 = arith.negf %159 : vector<2x64xf32>
    %161 = math.exp %160 : vector<2x64xf32>
    %cst_36 = arith.constant 1.000000e+00 : f32
    %162 = vector.broadcast %cst_36 : f32 to vector<2x64xf32>
    %163 = arith.addf %162, %161 : vector<2x64xf32>
    %164 = arith.divf %162, %163 : vector<2x64xf32>
    %165 = vector.extract_strided_slice %164 {offsets = [0, 0], sizes = [2, 32], strides = [1, 1]} : vector<2x64xf32> to vector<2x32xf32>
    %166 = vector.extract_strided_slice %164 {offsets = [0, 32], sizes = [2, 32], strides = [1, 1]} : vector<2x64xf32> to vector<2x32xf32>
    %167 = vector.extract_strided_slice %155 {offsets = [0, 64], sizes = [2, 32], strides = [1, 1]} : vector<2x96xf32> to vector<2x32xf32>
    %168 = vector.extract_strided_slice %156 {offsets = [0, 64], sizes = [2, 32], strides = [1, 1]} : vector<2x96xf32> to vector<2x32xf32>
    %169 = arith.addf %168, %9 : vector<2x32xf32>
    %170 = arith.mulf %165, %169 : vector<2x32xf32>
    %171 = arith.addf %167, %170 : vector<2x32xf32>
    %172 = math.tanh %171 : vector<2x32xf32>
    %cst_37 = arith.constant 1.000000e+00 : f32
    %173 = vector.broadcast %cst_37 : f32 to vector<2x32xf32>
    %174 = arith.subf %173, %166 : vector<2x32xf32>
    %175 = arith.mulf %174, %172 : vector<2x32xf32>
    %176 = arith.mulf %166, %153 : vector<2x32xf32>
    %177 = arith.addf %175, %176 : vector<2x32xf32>
    %c12 = arith.constant 12 : index
    %c0_38 = arith.constant 0 : index
    %178 = vector.load %arg14[%c12, %c0_38] : memref<16x32xf32, #tpu.memory_space<vmem>>, vector<2x32xf32>
    tpu.vector_store %arg14[%c12, %c0_38], %177 {strides = array<i32>} : memref<16x32xf32, #tpu.memory_space<vmem>>, vector<2x32xf32>,
    %179 = vector.extract_strided_slice %5 {offsets = [14, 0], sizes = [2, 96], strides = [1, 1]} : vector<16x96xf32> to vector<2x96xf32>
    %cst_39 = arith.constant dense<0.000000e+00> : vector<2x96xf32>
    %180 = tpu.matmul %177, %6, %cst_39 {dimension_numbers = #tpu.dot_dimension_numbers<[1], [0], [0], [1], [0, 0, 1, 1], [], []>} : vector<2x32xf32>, vector<32x96xf32>, vector<2x96xf32> -> vector<2x96xf32>
    %181 = vector.extract_strided_slice %179 {offsets = [0, 0], sizes = [2, 64], strides = [1, 1]} : vector<2x96xf32> to vector<2x64xf32>
    %182 = vector.extract_strided_slice %180 {offsets = [0, 0], sizes = [2, 64], strides = [1, 1]} : vector<2x96xf32> to vector<2x64xf32>
    %183 = arith.addf %181, %182 : vector<2x64xf32>
    %184 = arith.negf %183 : vector<2x64xf32>
    %185 = math.exp %184 : vector<2x64xf32>
    %cst_40 = arith.constant 1.000000e+00 : f32
    %186 = vector.broadcast %cst_40 : f32 to vector<2x64xf32>
    %187 = arith.addf %186, %185 : vector<2x64xf32>
    %188 = arith.divf %186, %187 : vector<2x64xf32>
    %189 = vector.extract_strided_slice %188 {offsets = [0, 0], sizes = [2, 32], strides = [1, 1]} : vector<2x64xf32> to vector<2x32xf32>
    %190 = vector.extract_strided_slice %188 {offsets = [0, 32], sizes = [2, 32], strides = [1, 1]} : vector<2x64xf32> to vector<2x32xf32>
    %191 = vector.extract_strided_slice %179 {offsets = [0, 64], sizes = [2, 32], strides = [1, 1]} : vector<2x96xf32> to vector<2x32xf32>
    %192 = vector.extract_strided_slice %180 {offsets = [0, 64], sizes = [2, 32], strides = [1, 1]} : vector<2x96xf32> to vector<2x32xf32>
    %193 = arith.addf %192, %9 : vector<2x32xf32>
    %194 = arith.mulf %189, %193 : vector<2x32xf32>
    %195 = arith.addf %191, %194 : vector<2x32xf32>
    %196 = math.tanh %195 : vector<2x32xf32>
    %cst_41 = arith.constant 1.000000e+00 : f32
    %197 = vector.broadcast %cst_41 : f32 to vector<2x32xf32>
    %198 = arith.subf %197, %190 : vector<2x32xf32>
    %199 = arith.mulf %198, %196 : vector<2x32xf32>
    %200 = arith.mulf %190, %177 : vector<2x32xf32>
    %201 = arith.addf %199, %200 : vector<2x32xf32>
    %c14 = arith.constant 14 : index
    %c0_42 = arith.constant 0 : index
    %202 = vector.load %arg14[%c14, %c0_42] : memref<16x32xf32, #tpu.memory_space<vmem>>, vector<2x32xf32>
    tpu.vector_store %arg14[%c14, %c0_42], %201 {strides = array<i32>} : memref<16x32xf32, #tpu.memory_space<vmem>>, vector<2x32xf32>,
    %c0_43 = arith.constant 0 : index
    %c0_44 = arith.constant 0 : index
    %203 = vector.load %arg14[%c0_43, %c0_44] : memref<16x32xf32, #tpu.memory_space<vmem>>, vector<16x32xf32>
    %c0_45 = arith.constant 0 : index
    %c0_46 = arith.constant 0 : index
    %204 = vector.load %arg5[%c0_45, %c0_46] : memref<32x96xf32, #tpu.memory_space<vmem>>, vector<32x96xf32>
    %cst_47 = arith.constant dense<0.000000e+00> : vector<16x96xf32>
    %205 = tpu.matmul %203, %204, %cst_47 {dimension_numbers = #tpu.dot_dimension_numbers<[1], [0], [0], [1], [0, 0, 1, 1], [], []>} : vector<16x32xf32>, vector<32x96xf32>, vector<16x96xf32> -> vector<16x96xf32>
    %c0_48 = arith.constant 0 : index
    %c0_49 = arith.constant 0 : index
    %206 = vector.load %arg6[%c0_48, %c0_49] : memref<1x96xf32, #tpu.memory_space<vmem>>, vector<1x96xf32>
    %207 = vector.broadcast %206 : vector<1x96xf32> to vector<16x96xf32>
    %208 = arith.addf %205, %207 : vector<16x96xf32>
    %c0_50 = arith.constant 0 : index
    %c0_51 = arith.constant 0 : index
    %209 = vector.load %arg7[%c0_50, %c0_51] : memref<32x96xf32, #tpu.memory_space<vmem>>, vector<32x96xf32>
    %c0_52 = arith.constant 0 : index
    %c0_53 = arith.constant 0 : index
    %210 = vector.load %arg8[%c0_52, %c0_53] : memref<1x32xf32, #tpu.memory_space<vmem>>, vector<1x32xf32>
    %211 = vector.shape_cast %210 : vector<1x32xf32> to vector<1x32xf32>
    %212 = vector.broadcast %211 : vector<1x32xf32> to vector<2x32xf32>
    %cst_54 = arith.constant 0.000000e+00 : f32
    %213 = vector.broadcast %cst_54 : f32 to vector<2x32xf32>
    %214 = vector.extract_strided_slice %208 {offsets = [0, 0], sizes = [2, 96], strides = [1, 1]} : vector<16x96xf32> to vector<2x96xf32>
    %cst_55 = arith.constant dense<0.000000e+00> : vector<2x96xf32>
    %215 = tpu.matmul %213, %209, %cst_55 {dimension_numbers = #tpu.dot_dimension_numbers<[1], [0], [0], [1], [0, 0, 1, 1], [], []>} : vector<2x32xf32>, vector<32x96xf32>, vector<2x96xf32> -> vector<2x96xf32>
    %216 = vector.extract_strided_slice %214 {offsets = [0, 0], sizes = [2, 64], strides = [1, 1]} : vector<2x96xf32> to vector<2x64xf32>
    %217 = vector.extract_strided_slice %215 {offsets = [0, 0], sizes = [2, 64], strides = [1, 1]} : vector<2x96xf32> to vector<2x64xf32>
    %218 = arith.addf %216, %217 : vector<2x64xf32>
    %219 = arith.negf %218 : vector<2x64xf32>
    %220 = math.exp %219 : vector<2x64xf32>
    %cst_56 = arith.constant 1.000000e+00 : f32
    %221 = vector.broadcast %cst_56 : f32 to vector<2x64xf32>
    %222 = arith.addf %221, %220 : vector<2x64xf32>
    %223 = arith.divf %221, %222 : vector<2x64xf32>
    %224 = vector.extract_strided_slice %223 {offsets = [0, 0], sizes = [2, 32], strides = [1, 1]} : vector<2x64xf32> to vector<2x32xf32>
    %225 = vector.extract_strided_slice %223 {offsets = [0, 32], sizes = [2, 32], strides = [1, 1]} : vector<2x64xf32> to vector<2x32xf32>
    %226 = vector.extract_strided_slice %214 {offsets = [0, 64], sizes = [2, 32], strides = [1, 1]} : vector<2x96xf32> to vector<2x32xf32>
    %227 = vector.extract_strided_slice %215 {offsets = [0, 64], sizes = [2, 32], strides = [1, 1]} : vector<2x96xf32> to vector<2x32xf32>
    %228 = arith.addf %227, %212 : vector<2x32xf32>
    %229 = arith.mulf %224, %228 : vector<2x32xf32>
    %230 = arith.addf %226, %229 : vector<2x32xf32>
    %231 = math.tanh %230 : vector<2x32xf32>
    %cst_57 = arith.constant 1.000000e+00 : f32
    %232 = vector.broadcast %cst_57 : f32 to vector<2x32xf32>
    %233 = arith.subf %232, %225 : vector<2x32xf32>
    %234 = arith.mulf %233, %231 : vector<2x32xf32>
    %235 = arith.mulf %225, %213 : vector<2x32xf32>
    %236 = arith.addf %234, %235 : vector<2x32xf32>
    %237 = vector.extract_strided_slice %208 {offsets = [2, 0], sizes = [2, 96], strides = [1, 1]} : vector<16x96xf32> to vector<2x96xf32>
    %cst_58 = arith.constant dense<0.000000e+00> : vector<2x96xf32>
    %238 = tpu.matmul %236, %209, %cst_58 {dimension_numbers = #tpu.dot_dimension_numbers<[1], [0], [0], [1], [0, 0, 1, 1], [], []>} : vector<2x32xf32>, vector<32x96xf32>, vector<2x96xf32> -> vector<2x96xf32>
    %239 = vector.extract_strided_slice %237 {offsets = [0, 0], sizes = [2, 64], strides = [1, 1]} : vector<2x96xf32> to vector<2x64xf32>
    %240 = vector.extract_strided_slice %238 {offsets = [0, 0], sizes = [2, 64], strides = [1, 1]} : vector<2x96xf32> to vector<2x64xf32>
    %241 = arith.addf %239, %240 : vector<2x64xf32>
    %242 = arith.negf %241 : vector<2x64xf32>
    %243 = math.exp %242 : vector<2x64xf32>
    %cst_59 = arith.constant 1.000000e+00 : f32
    %244 = vector.broadcast %cst_59 : f32 to vector<2x64xf32>
    %245 = arith.addf %244, %243 : vector<2x64xf32>
    %246 = arith.divf %244, %245 : vector<2x64xf32>
    %247 = vector.extract_strided_slice %246 {offsets = [0, 0], sizes = [2, 32], strides = [1, 1]} : vector<2x64xf32> to vector<2x32xf32>
    %248 = vector.extract_strided_slice %246 {offsets = [0, 32], sizes = [2, 32], strides = [1, 1]} : vector<2x64xf32> to vector<2x32xf32>
    %249 = vector.extract_strided_slice %237 {offsets = [0, 64], sizes = [2, 32], strides = [1, 1]} : vector<2x96xf32> to vector<2x32xf32>
    %250 = vector.extract_strided_slice %238 {offsets = [0, 64], sizes = [2, 32], strides = [1, 1]} : vector<2x96xf32> to vector<2x32xf32>
    %251 = arith.addf %250, %212 : vector<2x32xf32>
    %252 = arith.mulf %247, %251 : vector<2x32xf32>
    %253 = arith.addf %249, %252 : vector<2x32xf32>
    %254 = math.tanh %253 : vector<2x32xf32>
    %cst_60 = arith.constant 1.000000e+00 : f32
    %255 = vector.broadcast %cst_60 : f32 to vector<2x32xf32>
    %256 = arith.subf %255, %248 : vector<2x32xf32>
    %257 = arith.mulf %256, %254 : vector<2x32xf32>
    %258 = arith.mulf %248, %236 : vector<2x32xf32>
    %259 = arith.addf %257, %258 : vector<2x32xf32>
    %260 = vector.extract_strided_slice %208 {offsets = [4, 0], sizes = [2, 96], strides = [1, 1]} : vector<16x96xf32> to vector<2x96xf32>
    %cst_61 = arith.constant dense<0.000000e+00> : vector<2x96xf32>
    %261 = tpu.matmul %259, %209, %cst_61 {dimension_numbers = #tpu.dot_dimension_numbers<[1], [0], [0], [1], [0, 0, 1, 1], [], []>} : vector<2x32xf32>, vector<32x96xf32>, vector<2x96xf32> -> vector<2x96xf32>
    %262 = vector.extract_strided_slice %260 {offsets = [0, 0], sizes = [2, 64], strides = [1, 1]} : vector<2x96xf32> to vector<2x64xf32>
    %263 = vector.extract_strided_slice %261 {offsets = [0, 0], sizes = [2, 64], strides = [1, 1]} : vector<2x96xf32> to vector<2x64xf32>
    %264 = arith.addf %262, %263 : vector<2x64xf32>
    %265 = arith.negf %264 : vector<2x64xf32>
    %266 = math.exp %265 : vector<2x64xf32>
    %cst_62 = arith.constant 1.000000e+00 : f32
    %267 = vector.broadcast %cst_62 : f32 to vector<2x64xf32>
    %268 = arith.addf %267, %266 : vector<2x64xf32>
    %269 = arith.divf %267, %268 : vector<2x64xf32>
    %270 = vector.extract_strided_slice %269 {offsets = [0, 0], sizes = [2, 32], strides = [1, 1]} : vector<2x64xf32> to vector<2x32xf32>
    %271 = vector.extract_strided_slice %269 {offsets = [0, 32], sizes = [2, 32], strides = [1, 1]} : vector<2x64xf32> to vector<2x32xf32>
    %272 = vector.extract_strided_slice %260 {offsets = [0, 64], sizes = [2, 32], strides = [1, 1]} : vector<2x96xf32> to vector<2x32xf32>
    %273 = vector.extract_strided_slice %261 {offsets = [0, 64], sizes = [2, 32], strides = [1, 1]} : vector<2x96xf32> to vector<2x32xf32>
    %274 = arith.addf %273, %212 : vector<2x32xf32>
    %275 = arith.mulf %270, %274 : vector<2x32xf32>
    %276 = arith.addf %272, %275 : vector<2x32xf32>
    %277 = math.tanh %276 : vector<2x32xf32>
    %cst_63 = arith.constant 1.000000e+00 : f32
    %278 = vector.broadcast %cst_63 : f32 to vector<2x32xf32>
    %279 = arith.subf %278, %271 : vector<2x32xf32>
    %280 = arith.mulf %279, %277 : vector<2x32xf32>
    %281 = arith.mulf %271, %259 : vector<2x32xf32>
    %282 = arith.addf %280, %281 : vector<2x32xf32>
    %283 = vector.extract_strided_slice %208 {offsets = [6, 0], sizes = [2, 96], strides = [1, 1]} : vector<16x96xf32> to vector<2x96xf32>
    %cst_64 = arith.constant dense<0.000000e+00> : vector<2x96xf32>
    %284 = tpu.matmul %282, %209, %cst_64 {dimension_numbers = #tpu.dot_dimension_numbers<[1], [0], [0], [1], [0, 0, 1, 1], [], []>} : vector<2x32xf32>, vector<32x96xf32>, vector<2x96xf32> -> vector<2x96xf32>
    %285 = vector.extract_strided_slice %283 {offsets = [0, 0], sizes = [2, 64], strides = [1, 1]} : vector<2x96xf32> to vector<2x64xf32>
    %286 = vector.extract_strided_slice %284 {offsets = [0, 0], sizes = [2, 64], strides = [1, 1]} : vector<2x96xf32> to vector<2x64xf32>
    %287 = arith.addf %285, %286 : vector<2x64xf32>
    %288 = arith.negf %287 : vector<2x64xf32>
    %289 = math.exp %288 : vector<2x64xf32>
    %cst_65 = arith.constant 1.000000e+00 : f32
    %290 = vector.broadcast %cst_65 : f32 to vector<2x64xf32>
    %291 = arith.addf %290, %289 : vector<2x64xf32>
    %292 = arith.divf %290, %291 : vector<2x64xf32>
    %293 = vector.extract_strided_slice %292 {offsets = [0, 0], sizes = [2, 32], strides = [1, 1]} : vector<2x64xf32> to vector<2x32xf32>
    %294 = vector.extract_strided_slice %292 {offsets = [0, 32], sizes = [2, 32], strides = [1, 1]} : vector<2x64xf32> to vector<2x32xf32>
    %295 = vector.extract_strided_slice %283 {offsets = [0, 64], sizes = [2, 32], strides = [1, 1]} : vector<2x96xf32> to vector<2x32xf32>
    %296 = vector.extract_strided_slice %284 {offsets = [0, 64], sizes = [2, 32], strides = [1, 1]} : vector<2x96xf32> to vector<2x32xf32>
    %297 = arith.addf %296, %212 : vector<2x32xf32>
    %298 = arith.mulf %293, %297 : vector<2x32xf32>
    %299 = arith.addf %295, %298 : vector<2x32xf32>
    %300 = math.tanh %299 : vector<2x32xf32>
    %cst_66 = arith.constant 1.000000e+00 : f32
    %301 = vector.broadcast %cst_66 : f32 to vector<2x32xf32>
    %302 = arith.subf %301, %294 : vector<2x32xf32>
    %303 = arith.mulf %302, %300 : vector<2x32xf32>
    %304 = arith.mulf %294, %282 : vector<2x32xf32>
    %305 = arith.addf %303, %304 : vector<2x32xf32>
    %306 = vector.extract_strided_slice %208 {offsets = [8, 0], sizes = [2, 96], strides = [1, 1]} : vector<16x96xf32> to vector<2x96xf32>
    %cst_67 = arith.constant dense<0.000000e+00> : vector<2x96xf32>
    %307 = tpu.matmul %305, %209, %cst_67 {dimension_numbers = #tpu.dot_dimension_numbers<[1], [0], [0], [1], [0, 0, 1, 1], [], []>} : vector<2x32xf32>, vector<32x96xf32>, vector<2x96xf32> -> vector<2x96xf32>
    %308 = vector.extract_strided_slice %306 {offsets = [0, 0], sizes = [2, 64], strides = [1, 1]} : vector<2x96xf32> to vector<2x64xf32>
    %309 = vector.extract_strided_slice %307 {offsets = [0, 0], sizes = [2, 64], strides = [1, 1]} : vector<2x96xf32> to vector<2x64xf32>
    %310 = arith.addf %308, %309 : vector<2x64xf32>
    %311 = arith.negf %310 : vector<2x64xf32>
    %312 = math.exp %311 : vector<2x64xf32>
    %cst_68 = arith.constant 1.000000e+00 : f32
    %313 = vector.broadcast %cst_68 : f32 to vector<2x64xf32>
    %314 = arith.addf %313, %312 : vector<2x64xf32>
    %315 = arith.divf %313, %314 : vector<2x64xf32>
    %316 = vector.extract_strided_slice %315 {offsets = [0, 0], sizes = [2, 32], strides = [1, 1]} : vector<2x64xf32> to vector<2x32xf32>
    %317 = vector.extract_strided_slice %315 {offsets = [0, 32], sizes = [2, 32], strides = [1, 1]} : vector<2x64xf32> to vector<2x32xf32>
    %318 = vector.extract_strided_slice %306 {offsets = [0, 64], sizes = [2, 32], strides = [1, 1]} : vector<2x96xf32> to vector<2x32xf32>
    %319 = vector.extract_strided_slice %307 {offsets = [0, 64], sizes = [2, 32], strides = [1, 1]} : vector<2x96xf32> to vector<2x32xf32>
    %320 = arith.addf %319, %212 : vector<2x32xf32>
    %321 = arith.mulf %316, %320 : vector<2x32xf32>
    %322 = arith.addf %318, %321 : vector<2x32xf32>
    %323 = math.tanh %322 : vector<2x32xf32>
    %cst_69 = arith.constant 1.000000e+00 : f32
    %324 = vector.broadcast %cst_69 : f32 to vector<2x32xf32>
    %325 = arith.subf %324, %317 : vector<2x32xf32>
    %326 = arith.mulf %325, %323 : vector<2x32xf32>
    %327 = arith.mulf %317, %305 : vector<2x32xf32>
    %328 = arith.addf %326, %327 : vector<2x32xf32>
    %329 = vector.extract_strided_slice %208 {offsets = [10, 0], sizes = [2, 96], strides = [1, 1]} : vector<16x96xf32> to vector<2x96xf32>
    %cst_70 = arith.constant dense<0.000000e+00> : vector<2x96xf32>
    %330 = tpu.matmul %328, %209, %cst_70 {dimension_numbers = #tpu.dot_dimension_numbers<[1], [0], [0], [1], [0, 0, 1, 1], [], []>} : vector<2x32xf32>, vector<32x96xf32>, vector<2x96xf32> -> vector<2x96xf32>
    %331 = vector.extract_strided_slice %329 {offsets = [0, 0], sizes = [2, 64], strides = [1, 1]} : vector<2x96xf32> to vector<2x64xf32>
    %332 = vector.extract_strided_slice %330 {offsets = [0, 0], sizes = [2, 64], strides = [1, 1]} : vector<2x96xf32> to vector<2x64xf32>
    %333 = arith.addf %331, %332 : vector<2x64xf32>
    %334 = arith.negf %333 : vector<2x64xf32>
    %335 = math.exp %334 : vector<2x64xf32>
    %cst_71 = arith.constant 1.000000e+00 : f32
    %336 = vector.broadcast %cst_71 : f32 to vector<2x64xf32>
    %337 = arith.addf %336, %335 : vector<2x64xf32>
    %338 = arith.divf %336, %337 : vector<2x64xf32>
    %339 = vector.extract_strided_slice %338 {offsets = [0, 0], sizes = [2, 32], strides = [1, 1]} : vector<2x64xf32> to vector<2x32xf32>
    %340 = vector.extract_strided_slice %338 {offsets = [0, 32], sizes = [2, 32], strides = [1, 1]} : vector<2x64xf32> to vector<2x32xf32>
    %341 = vector.extract_strided_slice %329 {offsets = [0, 64], sizes = [2, 32], strides = [1, 1]} : vector<2x96xf32> to vector<2x32xf32>
    %342 = vector.extract_strided_slice %330 {offsets = [0, 64], sizes = [2, 32], strides = [1, 1]} : vector<2x96xf32> to vector<2x32xf32>
    %343 = arith.addf %342, %212 : vector<2x32xf32>
    %344 = arith.mulf %339, %343 : vector<2x32xf32>
    %345 = arith.addf %341, %344 : vector<2x32xf32>
    %346 = math.tanh %345 : vector<2x32xf32>
    %cst_72 = arith.constant 1.000000e+00 : f32
    %347 = vector.broadcast %cst_72 : f32 to vector<2x32xf32>
    %348 = arith.subf %347, %340 : vector<2x32xf32>
    %349 = arith.mulf %348, %346 : vector<2x32xf32>
    %350 = arith.mulf %340, %328 : vector<2x32xf32>
    %351 = arith.addf %349, %350 : vector<2x32xf32>
    %352 = vector.extract_strided_slice %208 {offsets = [12, 0], sizes = [2, 96], strides = [1, 1]} : vector<16x96xf32> to vector<2x96xf32>
    %cst_73 = arith.constant dense<0.000000e+00> : vector<2x96xf32>
    %353 = tpu.matmul %351, %209, %cst_73 {dimension_numbers = #tpu.dot_dimension_numbers<[1], [0], [0], [1], [0, 0, 1, 1], [], []>} : vector<2x32xf32>, vector<32x96xf32>, vector<2x96xf32> -> vector<2x96xf32>
    %354 = vector.extract_strided_slice %352 {offsets = [0, 0], sizes = [2, 64], strides = [1, 1]} : vector<2x96xf32> to vector<2x64xf32>
    %355 = vector.extract_strided_slice %353 {offsets = [0, 0], sizes = [2, 64], strides = [1, 1]} : vector<2x96xf32> to vector<2x64xf32>
    %356 = arith.addf %354, %355 : vector<2x64xf32>
    %357 = arith.negf %356 : vector<2x64xf32>
    %358 = math.exp %357 : vector<2x64xf32>
    %cst_74 = arith.constant 1.000000e+00 : f32
    %359 = vector.broadcast %cst_74 : f32 to vector<2x64xf32>
    %360 = arith.addf %359, %358 : vector<2x64xf32>
    %361 = arith.divf %359, %360 : vector<2x64xf32>
    %362 = vector.extract_strided_slice %361 {offsets = [0, 0], sizes = [2, 32], strides = [1, 1]} : vector<2x64xf32> to vector<2x32xf32>
    %363 = vector.extract_strided_slice %361 {offsets = [0, 32], sizes = [2, 32], strides = [1, 1]} : vector<2x64xf32> to vector<2x32xf32>
    %364 = vector.extract_strided_slice %352 {offsets = [0, 64], sizes = [2, 32], strides = [1, 1]} : vector<2x96xf32> to vector<2x32xf32>
    %365 = vector.extract_strided_slice %353 {offsets = [0, 64], sizes = [2, 32], strides = [1, 1]} : vector<2x96xf32> to vector<2x32xf32>
    %366 = arith.addf %365, %212 : vector<2x32xf32>
    %367 = arith.mulf %362, %366 : vector<2x32xf32>
    %368 = arith.addf %364, %367 : vector<2x32xf32>
    %369 = math.tanh %368 : vector<2x32xf32>
    %cst_75 = arith.constant 1.000000e+00 : f32
    %370 = vector.broadcast %cst_75 : f32 to vector<2x32xf32>
    %371 = arith.subf %370, %363 : vector<2x32xf32>
    %372 = arith.mulf %371, %369 : vector<2x32xf32>
    %373 = arith.mulf %363, %351 : vector<2x32xf32>
    %374 = arith.addf %372, %373 : vector<2x32xf32>
    %375 = vector.extract_strided_slice %208 {offsets = [14, 0], sizes = [2, 96], strides = [1, 1]} : vector<16x96xf32> to vector<2x96xf32>
    %cst_76 = arith.constant dense<0.000000e+00> : vector<2x96xf32>
    %376 = tpu.matmul %374, %209, %cst_76 {dimension_numbers = #tpu.dot_dimension_numbers<[1], [0], [0], [1], [0, 0, 1, 1], [], []>} : vector<2x32xf32>, vector<32x96xf32>, vector<2x96xf32> -> vector<2x96xf32>
    %377 = vector.extract_strided_slice %375 {offsets = [0, 0], sizes = [2, 64], strides = [1, 1]} : vector<2x96xf32> to vector<2x64xf32>
    %378 = vector.extract_strided_slice %376 {offsets = [0, 0], sizes = [2, 64], strides = [1, 1]} : vector<2x96xf32> to vector<2x64xf32>
    %379 = arith.addf %377, %378 : vector<2x64xf32>
    %380 = arith.negf %379 : vector<2x64xf32>
    %381 = math.exp %380 : vector<2x64xf32>
    %cst_77 = arith.constant 1.000000e+00 : f32
    %382 = vector.broadcast %cst_77 : f32 to vector<2x64xf32>
    %383 = arith.addf %382, %381 : vector<2x64xf32>
    %384 = arith.divf %382, %383 : vector<2x64xf32>
    %385 = vector.extract_strided_slice %384 {offsets = [0, 0], sizes = [2, 32], strides = [1, 1]} : vector<2x64xf32> to vector<2x32xf32>
    %386 = vector.extract_strided_slice %384 {offsets = [0, 32], sizes = [2, 32], strides = [1, 1]} : vector<2x64xf32> to vector<2x32xf32>
    %387 = vector.extract_strided_slice %375 {offsets = [0, 64], sizes = [2, 32], strides = [1, 1]} : vector<2x96xf32> to vector<2x32xf32>
    %388 = vector.extract_strided_slice %376 {offsets = [0, 64], sizes = [2, 32], strides = [1, 1]} : vector<2x96xf32> to vector<2x32xf32>
    %389 = arith.addf %388, %212 : vector<2x32xf32>
    %390 = arith.mulf %385, %389 : vector<2x32xf32>
    %391 = arith.addf %387, %390 : vector<2x32xf32>
    %392 = math.tanh %391 : vector<2x32xf32>
    %cst_78 = arith.constant 1.000000e+00 : f32
    %393 = vector.broadcast %cst_78 : f32 to vector<2x32xf32>
    %394 = arith.subf %393, %386 : vector<2x32xf32>
    %395 = arith.mulf %394, %392 : vector<2x32xf32>
    %396 = arith.mulf %386, %374 : vector<2x32xf32>
    %397 = arith.addf %395, %396 : vector<2x32xf32>
    %cst_79 = arith.constant dense<0.000000e+00> : vector<32xf32>
    %398 = vector.multi_reduction <add>, %397, %cst_79 [0] : vector<2x32xf32> to vector<32xf32>
    %399 = vector.shape_cast %398 : vector<32xf32> to vector<1x32xf32>
    %cst_80 = arith.constant 2.000000e+00 : f32
    %400 = vector.broadcast %cst_80 : f32 to vector<1x32xf32>
    %401 = arith.divf %399, %400 : vector<1x32xf32>
    %402 = vector.broadcast %401 : vector<1x32xf32> to vector<2x32xf32>
    %403 = arith.subf %397, %402 : vector<2x32xf32>
    %404 = arith.mulf %403, %403 : vector<2x32xf32>
    %cst_81 = arith.constant dense<0.000000e+00> : vector<32xf32>
    %405 = vector.multi_reduction <add>, %404, %cst_81 [0] : vector<2x32xf32> to vector<32xf32>
    %406 = vector.shape_cast %405 : vector<32xf32> to vector<1x32xf32>
    %cst_82 = arith.constant 2.000000e+00 : f32
    %407 = vector.broadcast %cst_82 : f32 to vector<1x32xf32>
    %408 = arith.divf %406, %407 : vector<1x32xf32>
    %409 = vector.broadcast %401 : vector<1x32xf32> to vector<2x32xf32>
    %410 = arith.subf %397, %409 : vector<2x32xf32>
    %cst_83 = arith.constant 9.99999974E-6 : f32
    %411 = vector.broadcast %cst_83 : f32 to vector<1x32xf32>
    %412 = arith.addf %408, %411 : vector<1x32xf32>
    %413 = math.rsqrt %412 : vector<1x32xf32>
    %414 = vector.broadcast %413 : vector<1x32xf32> to vector<2x32xf32>
    %415 = arith.mulf %410, %414 : vector<2x32xf32>
    %c0_84 = arith.constant 0 : index
    %c0_85 = arith.constant 0 : index
    %416 = vector.load %arg9[%c0_84, %c0_85] : memref<1x32xf32, #tpu.memory_space<vmem>>, vector<1x32xf32>
    %417 = vector.broadcast %416 : vector<1x32xf32> to vector<2x32xf32>
    %418 = arith.mulf %415, %417 : vector<2x32xf32>
    %c0_86 = arith.constant 0 : index
    %c0_87 = arith.constant 0 : index
    %419 = vector.load %arg10[%c0_86, %c0_87] : memref<1x32xf32, #tpu.memory_space<vmem>>, vector<1x32xf32>
    %420 = vector.broadcast %419 : vector<1x32xf32> to vector<2x32xf32>
    %421 = arith.addf %418, %420 : vector<2x32xf32>
    %cst_88 = arith.constant 0.000000e+00 : f32
    %422 = vector.broadcast %cst_88 : f32 to vector<2x32xf32>
    %423 = arith.maximumf %421, %422 : vector<2x32xf32>
    %c0_89 = arith.constant 0 : index
    %c0_90 = arith.constant 0 : index
    %424 = vector.load %arg11[%c0_89, %c0_90] : memref<32x3xf32, #tpu.memory_space<vmem>>, vector<32x3xf32>
    %cst_91 = arith.constant dense<0.000000e+00> : vector<2x3xf32>
    %425 = tpu.matmul %423, %424, %cst_91 {dimension_numbers = #tpu.dot_dimension_numbers<[1], [0], [0], [1], [0, 0, 1, 1], [], []>} : vector<2x32xf32>, vector<32x3xf32>, vector<2x3xf32> -> vector<2x3xf32>
    %c0_92 = arith.constant 0 : index
    %c0_93 = arith.constant 0 : index
    %426 = vector.load %arg12[%c0_92, %c0_93] : memref<1x3xf32, #tpu.memory_space<vmem>>, vector<1x3xf32>
    %427 = vector.broadcast %426 : vector<1x3xf32> to vector<2x3xf32>
    %428 = arith.addf %425, %427 : vector<2x3xf32>
    %c0_94 = arith.constant 0 : index
    %c0_95 = arith.constant 0 : index
    %429 = vector.load %arg13[%c0_94, %c0_95] : memref<2x3xf32, #tpu.memory_space<vmem>>, vector<2x3xf32>
    tpu.vector_store %arg13[%c0_94, %c0_95], %428 {strides = array<i32>} : memref<2x3xf32, #tpu.memory_space<vmem>>, vector<2x3xf32>,
    return
  }
}

</mosaic_0001>

<llo_original>
// kernel: rnn_forward.1
$region0: #{rnn_forward.1}
  #allocation0 [shape = 'u32[]', space=smem, size = 0x4, offset = 0x4, fixed_abs, tag = 'smem constant byte address 0x4 - core index']
  #allocation1 [shape = 'u32[144,128]{1,0:T(1,128)}', space=vmem, size = 0x12000, scoped, tag = 'internal scratch']
  #allocation2 [shape = 'f32[16,32]{1,0:T(8,128)}', space=vmem, size = 0x2000, scoped, tag = 'scratch operand']
  %s0 = inlined_call_operand.vmem [shape: f32[16,310], index: 0, kind: input, shape index: {}]
  %s1 = inlined_call_operand.vmem [shape: f32[310,96], index: 1, kind: input, shape index: {}]
  %s2 = inlined_call_operand.vmem [shape: f32[1,96], index: 2, kind: input, shape index: {}]
  %s3 = inlined_call_operand.vmem [shape: f32[32,96], index: 3, kind: input, shape index: {}]
  %s4 = inlined_call_operand.vmem [shape: f32[1,32], index: 4, kind: input, shape index: {}]
  %s5 = inlined_call_operand.vmem [shape: f32[32,96], index: 5, kind: input, shape index: {}]
  %s6 = inlined_call_operand.vmem [shape: f32[1,96], index: 6, kind: input, shape index: {}]
  %s7 = inlined_call_operand.vmem [shape: f32[32,96], index: 7, kind: input, shape index: {}]
  %s8 = inlined_call_operand.vmem [shape: f32[1,32], index: 8, kind: input, shape index: {}]
  %s9 = inlined_call_operand.vmem [shape: f32[1,32], index: 9, kind: input, shape index: {}]
  %s10 = inlined_call_operand.vmem [shape: f32[1,32], index: 10, kind: input, shape index: {}]
  %s11 = inlined_call_operand.vmem [shape: f32[32,3], index: 11, kind: input, shape index: {}]
  %s12 = inlined_call_operand.vmem [shape: f32[1,3], index: 12, kind: input, shape index: {}]
  %s13 = inlined_call_operand.vmem [shape: f32[2,3], index: 13, kind: output, shape index: {}]
  %s14 = sld [smem:[#allocation0]]
  $region62: #{rnn_forward.1} parent=0
    _
  %s16 = ssub.s32 1, %s14
  %s17 = scalar_select 0, %s16, %s14
  // Predicated region
  $region2: #{rnn_forward.1} parent=0 // pred_check
    _
  $region3: #{rnn_forward.1} parent=0 // pred_check_branch
    %19 = sbr.rel (0) target = $region5
  $region4: #{rnn_forward.1} parent=0 // pred_region
    _
  $region5: #{rnn_forward.1} parent=0 // pred_fallthru
    _
  // Predicated region
  $region6: #{rnn_forward.1} parent=0 // pred_check
    _
  $region7: #{rnn_forward.1} parent=0 // pred_check_branch
    %21 = sbr.rel (0) target = $region9
  $region8: #{rnn_forward.1} parent=0 // pred_region
    _
  $region9: #{rnn_forward.1} parent=0 // pred_fallthru
    _
  // Predicated region
  $region10: #{rnn_forward.1} parent=0 // pred_check
    _
  $region11: #{rnn_forward.1} parent=0 // pred_check_branch
    %23 = sbr.rel (0) target = $region13
  $region12: #{rnn_forward.1} parent=0 // pred_region
    _
  $region13: #{rnn_forward.1} parent=0 // pred_fallthru
    _
  // Predicated region
  $region14: #{rnn_forward.1} parent=0 // pred_check
    _
  $region15: #{rnn_forward.1} parent=0 // pred_check_branch
    %25 = sbr.rel (0) target = $region17
  $region16: #{rnn_forward.1} parent=0 // pred_region
    _
  $region17: #{rnn_forward.1} parent=0 // pred_fallthru
    _
  // Predicated region
  $region18: #{rnn_forward.1} parent=0 // pred_check
    _
  $region19: #{rnn_forward.1} parent=0 // pred_check_branch
    %27 = sbr.rel (0) target = $region21
  $region20: #{rnn_forward.1} parent=0 // pred_region
    _
  $region21: #{rnn_forward.1} parent=0 // pred_fallthru
    _
  // Predicated region
  $region22: #{rnn_forward.1} parent=0 // pred_check
    _
  $region23: #{rnn_forward.1} parent=0 // pred_check_branch
    %29 = sbr.rel (0) target = $region25
  $region24: #{rnn_forward.1} parent=0 // pred_region
    _
  $region25: #{rnn_forward.1} parent=0 // pred_fallthru
    _
  // Predicated region
  $region26: #{rnn_forward.1} parent=0 // pred_check
    _
  $region27: #{rnn_forward.1} parent=0 // pred_check_branch
    %31 = sbr.rel (0) target = $region29
  $region28: #{rnn_forward.1} parent=0 // pred_region
    _
  $region29: #{rnn_forward.1} parent=0 // pred_fallthru
    _
  // Predicated region
  $region30: #{rnn_forward.1} parent=0 // pred_check
    _
  $region31: #{rnn_forward.1} parent=0 // pred_check_branch
    %33 = sbr.rel (0) target = $region33
  $region32: #{rnn_forward.1} parent=0 // pred_region
    _
  $region33: #{rnn_forward.1} parent=0 // pred_fallthru
    _
  // Predicated region
  $region34: #{rnn_forward.1} parent=0 // pred_check
    _
  $region35: #{rnn_forward.1} parent=0 // pred_check_branch
    %35 = sbr.rel (0) target = $region37
  $region36: #{rnn_forward.1} parent=0 // pred_region
    _
  $region37: #{rnn_forward.1} parent=0 // pred_fallthru
    _
  // Predicated region
  $region38: #{rnn_forward.1} parent=0 // pred_check
    _
  $region39: #{rnn_forward.1} parent=0 // pred_check_branch
    %37 = sbr.rel (0) target = $region41
  $region40: #{rnn_forward.1} parent=0 // pred_region
    _
  $region41: #{rnn_forward.1} parent=0 // pred_fallthru
    _
  // Predicated region
  $region42: #{rnn_forward.1} parent=0 // pred_check
    _
  $region43: #{rnn_forward.1} parent=0 // pred_check_branch
    %39 = sbr.rel (0) target = $region45
  $region44: #{rnn_forward.1} parent=0 // pred_region
    _
  $region45: #{rnn_forward.1} parent=0 // pred_fallthru
    _
  // Predicated region
  $region46: #{rnn_forward.1} parent=0 // pred_check
    _
  $region47: #{rnn_forward.1} parent=0 // pred_check_branch
    %41 = sbr.rel (0) target = $region49
  $region48: #{rnn_forward.1} parent=0 // pred_region
    _
  $region49: #{rnn_forward.1} parent=0 // pred_fallthru
    _
  // Predicated region
  $region50: #{rnn_forward.1} parent=0 // pred_check
    _
  $region51: #{rnn_forward.1} parent=0 // pred_check_branch
    %43 = sbr.rel (0) target = $region53
  $region52: #{rnn_forward.1} parent=0 // pred_region
    _
  $region53: #{rnn_forward.1} parent=0 // pred_fallthru
    _
  %v44 = vld [vmem:[%s0] sm:$0xff]
  %v45 = vld [vmem:[%s0 + $0x8] sm:$0xff]
  %v46 = vld [vmem:[%s0 + $0x10] sm:$0xff]
  %v47 = vld [vmem:[%s0 + $0x18] sm:$0xff]
  %v48 = vld [vmem:[%s0 + $0x20] sm:$0xff]
  %v49 = vld [vmem:[%s0 + $0x28] sm:$0xff]
  %v50 = vld [vmem:[%s1] sm:$0xff]
  %v51 = vld [vmem:[%s1 + $0x8] sm:$0xff]
  %v52 = vld [vmem:[%s1 + $0x10] sm:$0xff]
  %v53 = vld [vmem:[%s1 + $0x18] sm:$0xff]
  %v54 = vld [vmem:[%s1 + $0x20] sm:$0xff]
  %v55 = vld [vmem:[%s1 + $0x28] sm:$0xff]
  %v56 = vld [vmem:[%s1 + $0x30] sm:$0xff]
  %v57 = vld [vmem:[%s1 + $0x38] sm:$0xff]
  %v58 = vld [vmem:[%s1 + $0x40] sm:$0xff]
  %v59 = vld [vmem:[%s1 + $0x48] sm:$0xff]
  %v60 = vld [vmem:[%s1 + $0x50] sm:$0xff]
  %v61 = vld [vmem:[%s1 + $0x58] sm:$0xff]
  %v62 = vld [vmem:[%s1 + $0x60] sm:$0xff]
  %v63 = vld [vmem:[%s1 + $0x68] sm:$0xff]
  %v64 = vld [vmem:[%s1 + $0x70] sm:$0xff]
  %v65 = vld [vmem:[%s1 + $0x78] sm:$0xff]
  %v66 = vld [vmem:[%s1 + $0x80] sm:$0xff]
  %v67 = vld [vmem:[%s1 + $0x88] sm:$0xff]
  %v68 = vld [vmem:[%s1 + $0x90] sm:$0xff]
  %v69 = vld [vmem:[%s1 + $0x98] sm:$0xff]
  %v70 = vld [vmem:[%s1 + $0xa0] sm:$0xff]
  %v71 = vld [vmem:[%s1 + $0xa8] sm:$0xff]
  %v72 = vld [vmem:[%s1 + $0xb0] sm:$0xff]
  %v73 = vld [vmem:[%s1 + $0xb8] sm:$0xff]
  %v74 = vld [vmem:[%s1 + $0xc0] sm:$0xff]
  %v75 = vld [vmem:[%s1 + $0xc8] sm:$0xff]
  %v76 = vld [vmem:[%s1 + $0xd0] sm:$0xff]
  %v77 = vld [vmem:[%s1 + $0xd8] sm:$0xff]
  %v78 = vld [vmem:[%s1 + $0xe0] sm:$0xff]
  %v79 = vld [vmem:[%s1 + $0xe8] sm:$0xff]
  %v80 = vld [vmem:[%s1 + $0xf0] sm:$0xff]
  %v81 = vld [vmem:[%s1 + $0xf8] sm:$0xff]
  %v82 = vld [vmem:[%s1 + $0x100] sm:$0xff]
  %v83 = vld [vmem:[%s1 + $0x108] sm:$0xff]
  %v84 = vld [vmem:[%s1 + $0x110] sm:$0xff]
  %v85 = vld [vmem:[%s1 + $0x118] sm:$0xff]
  %v86 = vld [vmem:[%s1 + $0x120] sm:$0xff]
  %v87 = vld [vmem:[%s1 + $0x128] sm:$0xff]
  %v88 = vld [vmem:[%s1 + $0x130] sm:$0x3f]
  %v89 = vld [vmem:[%s2] sm:$0x1]
  %v91 = vlaneseq
  %v92 = vshrl.u32 %v91, 7
  %v93 = vsub.s32 0, %v92
  %v94 = vrot.slane %v89, %v93
  %vm96 = vcmask 441344
  %v98 = vsel %vm96, %v46, 0
  %v101 = vsel %vm96, %v49, 0
  %vm103 = vcmask 1045504
  %v105 = vsel %vm103, %v88, 0
  %107 = vmatprep.subr.mxu0 0.0
  %108 = vmatpush1.msra.mxu0 %v50
  %109 = vmatprep.subr.mxu0 0.0
  %110 = vmatpush1.msra.mxu0 %v51
  %111 = vmatprep.subr.mxu0 0.0
  %112 = vmatpush1.msra.mxu0 %v52
  %113 = vmatprep.subr.mxu0 0.0
  %114 = vmatpush1.msra.mxu0 %v53
  %115 = vmatprep.subr.mxu0 0.0
  %116 = vmatpush1.msra.mxu0 %v54
  %117 = vmatprep.subr.mxu0 0.0
  %118 = vmatpush1.msra.mxu0 %v55
  %119 = vmatprep.subr.mxu0 0.0
  %120 = vmatpush1.msra.mxu0 %v56
  %121 = vmatprep.subr.mxu0 0.0
  %122 = vmatpush1.msra.mxu0 %v57
  %123 = vmatprep.subr.mxu0 0.0
  %124 = vmatpush1.msra.mxu0 %v58
  %125 = vmatprep.subr.mxu0 0.0
  %126 = vmatpush1.msra.mxu0 %v59
  %127 = vmatprep.subr.mxu0 0.0
  %128 = vmatpush1.msra.mxu0 %v60
  %129 = vmatprep.subr.mxu0 0.0
  %130 = vmatpush1.msra.mxu0 %v61
  %131 = vmatprep.subr.mxu0 0.0
  %132 = vmatpush1.msra.mxu0 %v62
  %133 = vmatprep.subr.mxu0 0.0
  %134 = vmatpush1.msra.mxu0 %v63
  %135 = vmatprep.subr.mxu0 0.0
  %136 = vmatpush1.msra.mxu0 %v64
  %137 = vmatprep.subr.mxu0 0.0
  %138 = vmatpush1.msra.mxu0 %v65
  %139 = vmatprep.subr.mxu0 0.0
  %140 = vmatpush1.msra.mxu0 %v66
  %141 = vmatprep.subr.mxu0 0.0
  %142 = vmatpush1.msra.mxu0 %v67
  %143 = vmatprep.subr.mxu0 0.0
  %144 = vmatpush1.msra.mxu0 %v68
  %145 = vmatprep.subr.mxu0 0.0
  %146 = vmatpush1.msra.mxu0 %v69
  %147 = vmatprep.subr.mxu0 0.0
  %148 = vmatpush1.msra.mxu0 %v70
  %149 = vmatprep.subr.mxu0 0.0
  %150 = vmatpush1.msra.mxu0 %v71
  %151 = vmatprep.subr.mxu0 0.0
  %152 = vmatpush1.msra.mxu0 %v72
  %153 = vmatprep.subr.mxu0 0.0
  %154 = vmatpush1.msra.mxu0 %v73
  %155 = vmatprep.subr.mxu0 0.0
  %156 = vmatpush1.msra.mxu0 %v74
  %157 = vmatprep.subr.mxu0 0.0
  %158 = vmatpush1.msra.mxu0 %v75
  %159 = vmatprep.subr.mxu0 0.0
  %160 = vmatpush1.msra.mxu0 %v76
  %161 = vmatprep.subr.mxu0 0.0
  %162 = vmatpush1.msra.mxu0 %v77
  %163 = vmatprep.subr.mxu0 0.0
  %164 = vmatpush1.msra.mxu0 %v78
  %165 = vmatprep.subr.mxu0 0.0
  %166 = vmatpush1.msra.mxu0 %v79
  %167 = vmatprep.subr.mxu0 0.0
  %168 = vmatpush1.msra.mxu0 %v80
  %169 = vmatprep.subr.mxu0 0.0
  %170 = vmatpush1.msra.mxu0 %v81
  %171 = vmatprep.mubr.f32.mxu0 %v45
  %172 = vmatmul.mubr.f32.gmra.mrb[0].mxu0 %v44
  %v173 = vpop.f32.mrb[0].mxu0
  %v174 = vadd.f32 %v94, %v173
  %v175 = vpop.f32.mrb[0].mxu0
  %176 = vmatprep.mubr.f32.mxu0 %v48
  %177 = vmatmul.mubr.f32.gmra.mrb[0].mxu0 %v47
  %v178 = vpop.f32.mrb[0].mxu0
  %v179 = vadd.f32 %v94, %v178
  %v180 = vpop.f32.mrb[0].mxu0
  %181 = vdwg.mxu0
  %182 = vmatprep.subr.mxu0 0.0
  %183 = vmatpush1.msra.mxu0 %v82
  %184 = vmatprep.subr.mxu0 0.0
  %185 = vmatpush1.msra.mxu0 %v83
  %186 = vmatprep.subr.mxu0 0.0
  %187 = vmatpush1.msra.mxu0 %v84
  %188 = vmatprep.subr.mxu0 0.0
  %189 = vmatpush1.msra.mxu0 %v85
  %190 = vmatprep.subr.mxu0 0.0
  %191 = vmatpush1.msra.mxu0 %v86
  %192 = vmatprep.subr.mxu0 0.0
  %193 = vmatpush1.msra.mxu0 %v87
  %194 = vmatprep.subr.mxu0 0.0
  %195 = vmatpush1.msra.mxu0 %v105
  %196 = vmatprep.subr.mxu0 0.0
  %197 = vmatpush1.msra.mxu0 0.0
  %198 = vmatprep.subr.mxu0 0.0
  %199 = vmatpush1.msra.mxu0 0.0
  %200 = vmatprep.subr.mxu0 0.0
  %201 = vmatpush1.msra.mxu0 0.0
  %202 = vmatprep.subr.mxu0 0.0
  %203 = vmatpush1.msra.mxu0 0.0
  %204 = vmatprep.subr.mxu0 0.0
  %205 = vmatpush1.msra.mxu0 0.0
  %206 = vmatprep.subr.mxu0 0.0
  %207 = vmatpush1.msra.mxu0 0.0
  %208 = vmatprep.subr.mxu0 0.0
  %209 = vmatpush1.msra.mxu0 0.0
  %210 = vmatprep.subr.mxu0 0.0
  %211 = vmatpush1.msra.mxu0 0.0
  %212 = vmatprep.subr.mxu0 0.0
  %213 = vmatpush1.msra.mxu0 0.0
  %214 = vmatprep.subr.mxu0 0.0
  %215 = vmatpush1.msra.mxu0 0.0
  %216 = vmatprep.subr.mxu0 0.0
  %217 = vmatpush1.msra.mxu0 0.0
  %218 = vmatprep.subr.mxu0 0.0
  %219 = vmatpush1.msra.mxu0 0.0
  %220 = vmatprep.subr.mxu0 0.0
  %221 = vmatpush1.msra.mxu0 0.0
  %222 = vmatprep.subr.mxu0 0.0
  %223 = vmatpush1.msra.mxu0 0.0
  %224 = vmatprep.subr.mxu0 0.0
  %225 = vmatpush1.msra.mxu0 0.0
  %226 = vmatprep.subr.mxu0 0.0
  %227 = vmatpush1.msra.mxu0 0.0
  %228 = vmatprep.subr.mxu0 0.0
  %229 = vmatpush1.msra.mxu0 0.0
  %230 = vmatprep.subr.mxu0 0.0
  %231 = vmatpush1.msra.mxu0 0.0
  %232 = vmatprep.subr.mxu0 0.0
  %233 = vmatpush1.msra.mxu0 0.0
  %234 = vmatprep.subr.mxu0 0.0
  %235 = vmatpush1.msra.mxu0 0.0
  %236 = vmatprep.subr.mxu0 0.0
  %237 = vmatpush1.msra.mxu0 0.0
  %238 = vmatprep.subr.mxu0 0.0
  %239 = vmatpush1.msra.mxu0 0.0
  %240 = vmatprep.subr.mxu0 0.0
  %241 = vmatpush1.msra.mxu0 0.0
  %242 = vmatprep.subr.mxu0 0.0
  %243 = vmatpush1.msra.mxu0 0.0
  %244 = vmatprep.subr.mxu0 0.0
  %245 = vmatpush1.msra.mxu0 0.0
  %246 = vmatprep.mubr.f32.mxu0 0.0
  %247 = vmatmul.mubr.f32.gmra.mrb[0].mxu0 %v98
  %v248 = vpop.f32.mrb[0].mxu0
  %v249 = vadd.f32 %v174, %v248
  %v250 = vpop.f32.mrb[0].mxu0
  %251 = vmatprep.mubr.f32.mxu0 0.0
  %252 = vmatmul.mubr.f32.gmra.mrb[0].mxu0 %v101
  %v253 = vpop.f32.mrb[0].mxu0
  %v254 = vadd.f32 %v179, %v253
  %v255 = vpop.f32.mrb[0].mxu0
  %256 = vdwg.mxu0
  %v257 = vld [vmem:[%s3] sm:$0xff]
  %v258 = vld [vmem:[%s3 + $0x8] sm:$0xff]
  %v259 = vld [vmem:[%s3 + $0x10] sm:$0xff]
  %v260 = vld [vmem:[%s3 + $0x18] sm:$0xff]
  %v261 = vld [vmem:[%s4] sm:$0x1]
  %v263 = vlaneseq
  %v264 = vshrl.u32 %v263, 7
  %v265 = vsub.s32 0, %v264
  %v266 = vrot.slane %v261, %v265
  %vm267 = vcmask 261120
  %v269 = vsel %vm267, 0.0, 0
  %271 = vmatprep.subr.mxu0 0.0
  %272 = vmatpush1.msra.mxu0 %v257
  %273 = vmatprep.subr.mxu0 0.0
  %274 = vmatpush1.msra.mxu0 %v258
  %275 = vmatprep.subr.mxu0 0.0
  %276 = vmatpush1.msra.mxu0 %v259
  %277 = vmatprep.subr.mxu0 0.0
  %278 = vmatpush1.msra.mxu0 %v260
  %279 = vmatprep.subr.mxu0 0.0
  %280 = vmatpush1.msra.mxu0 0.0
  %281 = vmatprep.subr.mxu0 0.0
  %282 = vmatpush1.msra.mxu0 0.0
  %283 = vmatprep.subr.mxu0 0.0
  %284 = vmatpush1.msra.mxu0 0.0
  %285 = vmatprep.subr.mxu0 0.0
  %286 = vmatpush1.msra.mxu0 0.0
  %287 = vmatprep.subr.mxu0 0.0
  %288 = vmatpush1.msra.mxu0 0.0
  %289 = vmatprep.subr.mxu0 0.0
  %290 = vmatpush1.msra.mxu0 0.0
  %291 = vmatprep.subr.mxu0 0.0
  %292 = vmatpush1.msra.mxu0 0.0
  %293 = vmatprep.subr.mxu0 0.0
  %294 = vmatpush1.msra.mxu0 0.0
  %295 = vmatprep.subr.mxu0 0.0
  %296 = vmatpush1.msra.mxu0 0.0
  %297 = vmatprep.subr.mxu0 0.0
  %298 = vmatpush1.msra.mxu0 0.0
  %299 = vmatprep.subr.mxu0 0.0
  %300 = vmatpush1.msra.mxu0 0.0
  %301 = vmatprep.subr.mxu0 0.0
  %302 = vmatpush1.msra.mxu0 0.0
  %303 = vmatprep.subr.mxu0 0.0
  %304 = vmatpush1.msra.mxu0 0.0
  %305 = vmatprep.subr.mxu0 0.0
  %306 = vmatpush1.msra.mxu0 0.0
  %307 = vmatprep.subr.mxu0 0.0
  %308 = vmatpush1.msra.mxu0 0.0
  %309 = vmatprep.subr.mxu0 0.0
  %310 = vmatpush1.msra.mxu0 0.0
  %311 = vmatprep.subr.mxu0 0.0
  %312 = vmatpush1.msra.mxu0 0.0
  %313 = vmatprep.subr.mxu0 0.0
  %314 = vmatpush1.msra.mxu0 0.0
  %315 = vmatprep.subr.mxu0 0.0
  %316 = vmatpush1.msra.mxu0 0.0
  %317 = vmatprep.subr.mxu0 0.0
  %318 = vmatpush1.msra.mxu0 0.0
  %319 = vmatprep.subr.mxu0 0.0
  %320 = vmatpush1.msra.mxu0 0.0
  %321 = vmatprep.subr.mxu0 0.0
  %322 = vmatpush1.msra.mxu0 0.0
  %323 = vmatprep.subr.mxu0 0.0
  %324 = vmatpush1.msra.mxu0 0.0
  %325 = vmatprep.subr.mxu0 0.0
  %326 = vmatpush1.msra.mxu0 0.0
  %327 = vmatprep.subr.mxu0 0.0
  %328 = vmatpush1.msra.mxu0 0.0
  %329 = vmatprep.subr.mxu0 0.0
  %330 = vmatpush1.msra.mxu0 0.0
  %331 = vmatprep.subr.mxu0 0.0
  %332 = vmatpush1.msra.mxu0 0.0
  %333 = vmatprep.subr.mxu0 0.0
  %334 = vmatpush1.msra.mxu0 0.0
  %335 = vmatprep.mubr.f32.mxu0 0.0
  %336 = vmatmul.mubr.f32.gmra.mrb[0].mxu0 %v269
  %v337 = vpop.f32.mrb[0].mxu0
  %v338 = vadd.f32 0.0, %v337
  %v339 = vpop.f32.mrb[0].mxu0
  %340 = vdwg.mxu0
  %v341 = vadd.f32 %v249, %v338
  %v342 = vxor.u32 %v341, 2147483648
  %v343 = vmul.f32 %v342, 1.442695
  %v344 = vpow.pop %v343
  %v345 = vadd.f32 %v344, 1.0
  %v346 = vrcp.pop %v345
  %v347 = vmul.f32 1.0, %v346
  %348 = vrot.lane.b32.xlu0 %v266, 64
  %v349 = vpop.permute.xlu0 %348
  %v351 = vadd.f32 %v338, %v349
  %353 = vrot.lane.b32.xlu0 %v351, 64
  %v354 = vpop.permute.xlu0 %353
  %v356 = vmul.f32 %v347, %v354
  %358 = vrot.lane.b32.xlu0 %v356, 64
  %v359 = vpop.permute.xlu0 %358
  %v361 = vadd.f32 %v249, %v359
  %v362 = vtanh.pop %v361
  %v363 = vsub.f32 1.0, %v347
  %365 = vrot.lane.b32.xlu0 %v362, 96
  %v366 = vpop.permute.xlu0 %365
  %v368 = vmul.f32 %v363, %v366
  %v369 = vmul.f32 %v347, 0.0
  %v370 = vadd.f32 %v368, %v369
  %372 = vrot.lane.b32.xlu0 %v370, 96
  %v373 = vpop.permute.xlu0 %372
  %vm375 = vcmask 254976
  %376 = vst.msk [vmem:[#allocation2] sm:$0x3] %vm375, %v373
  %v377 = vsel %vm267, %v373, 0
  %379 = vmatprep.subr.mxu0 0.0
  %380 = vmatpush1.msra.mxu0 %v257
  %381 = vmatprep.subr.mxu0 0.0
  %382 = vmatpush1.msra.mxu0 %v258
  %383 = vmatprep.subr.mxu0 0.0
  %384 = vmatpush1.msra.mxu0 %v259
  %385 = vmatprep.subr.mxu0 0.0
  %386 = vmatpush1.msra.mxu0 %v260
  %387 = vmatprep.subr.mxu0 0.0
  %388 = vmatpush1.msra.mxu0 0.0
  %389 = vmatprep.subr.mxu0 0.0
  %390 = vmatpush1.msra.mxu0 0.0
  %391 = vmatprep.subr.mxu0 0.0
  %392 = vmatpush1.msra.mxu0 0.0
  %393 = vmatprep.subr.mxu0 0.0
  %394 = vmatpush1.msra.mxu0 0.0
  %395 = vmatprep.subr.mxu0 0.0
  %396 = vmatpush1.msra.mxu0 0.0
  %397 = vmatprep.subr.mxu0 0.0
  %398 = vmatpush1.msra.mxu0 0.0
  %399 = vmatprep.subr.mxu0 0.0
  %400 = vmatpush1.msra.mxu0 0.0
  %401 = vmatprep.subr.mxu0 0.0
  %402 = vmatpush1.msra.mxu0 0.0
  %403 = vmatprep.subr.mxu0 0.0
  %404 = vmatpush1.msra.mxu0 0.0
  %405 = vmatprep.subr.mxu0 0.0
  %406 = vmatpush1.msra.mxu0 0.0
  %407 = vmatprep.subr.mxu0 0.0
  %408 = vmatpush1.msra.mxu0 0.0
  %409 = vmatprep.subr.mxu0 0.0
  %410 = vmatpush1.msra.mxu0 0.0
  %411 = vmatprep.subr.mxu0 0.0
  %412 = vmatpush1.msra.mxu0 0.0
  %413 = vmatprep.subr.mxu0 0.0
  %414 = vmatpush1.msra.mxu0 0.0
  %415 = vmatprep.subr.mxu0 0.0
  %416 = vmatpush1.msra.mxu0 0.0
  %417 = vmatprep.subr.mxu0 0.0
  %418 = vmatpush1.msra.mxu0 0.0
  %419 = vmatprep.subr.mxu0 0.0
  %420 = vmatpush1.msra.mxu0 0.0
  %421 = vmatprep.subr.mxu0 0.0
  %422 = vmatpush1.msra.mxu0 0.0
  %423 = vmatprep.subr.mxu0 0.0
  %424 = vmatpush1.msra.mxu0 0.0
  %425 = vmatprep.subr.mxu0 0.0
  %426 = vmatpush1.msra.mxu0 0.0
  %427 = vmatprep.subr.mxu0 0.0
  %428 = vmatpush1.msra.mxu0 0.0
  %429 = vmatprep.subr.mxu0 0.0
  %430 = vmatpush1.msra.mxu0 0.0
  %431 = vmatprep.subr.mxu0 0.0
  %432 = vmatpush1.msra.mxu0 0.0
  %433 = vmatprep.subr.mxu0 0.0
  %434 = vmatpush1.msra.mxu0 0.0
  %435 = vmatprep.subr.mxu0 0.0
  %436 = vmatpush1.msra.mxu0 0.0
  %437 = vmatprep.subr.mxu0 0.0
  %438 = vmatpush1.msra.mxu0 0.0
  %439 = vmatprep.subr.mxu0 0.0
  %440 = vmatpush1.msra.mxu0 0.0
  %441 = vmatprep.subr.mxu0 0.0
  %442 = vmatpush1.msra.mxu0 0.0
  %443 = vmatprep.mubr.f32.mxu0 0.0
  %444 = vmatmul.mubr.f32.gmra.mrb[0].mxu0 %v377
  %v445 = vpop.f32.mrb[0].mxu0
  %v446 = vadd.f32 0.0, %v445
  %v447 = vpop.f32.mrb[0].mxu0
  %448 = vdwg.mxu0
  %v450 = vrot.slane %v446, 6
  %v452 = vadd.f32 %v249, %v450
  %v453 = vxor.u32 %v452, 2147483648
  %v454 = vmul.f32 %v453, 1.442695
  %v455 = vpow.pop %v454
  %v456 = vadd.f32 %v455, 1.0
  %v457 = vrcp.pop %v456
  %v458 = vmul.f32 1.0, %v457
  %v459 = vadd.f32 %v446, %v349
  %v461 = vrot.slane %v459, 6
  %462 = vrot.lane.b32.xlu0 %v461, 64
  %v463 = vpop.permute.xlu0 %462
  %v465 = vmul.f32 %v458, %v463
  %467 = vrot.lane.b32.xlu0 %v465, 64
  %v468 = vpop.permute.xlu0 %467
  %v470 = vadd.f32 %v249, %v468
  %v471 = vtanh.pop %v470
  %v472 = vsub.f32 1.0, %v458
  %474 = vrot.lane.b32.xlu0 %v471, 96
  %v475 = vpop.permute.xlu0 %474
  %v477 = vmul.f32 %v472, %v475
  %v478 = vrot.slane %v370, 6
  %v480 = vmul.f32 %v458, %v478
  %v481 = vadd.f32 %v477, %v480
  %483 = vrot.lane.b32.xlu0 %v481, 96
  %v484 = vpop.permute.xlu0 %483
  %vm486 = vcmask 257026
  %487 = vst.msk [vmem:[#allocation2] sm:$0xc] %vm486, %v484
  %v488 = vrot.slane %v481, 2
  %489 = vrot.lane.b32.xlu0 %v488, 96
  %v490 = vpop.permute.xlu0 %489
  %v491 = vsel %vm267, %v490, 0
  %493 = vmatprep.subr.mxu0 0.0
  %494 = vmatpush1.msra.mxu0 %v257
  %495 = vmatprep.subr.mxu0 0.0
  %496 = vmatpush1.msra.mxu0 %v258
  %497 = vmatprep.subr.mxu0 0.0
  %498 = vmatpush1.msra.mxu0 %v259
  %499 = vmatprep.subr.mxu0 0.0
  %500 = vmatpush1.msra.mxu0 %v260
  %501 = vmatprep.subr.mxu0 0.0
  %502 = vmatpush1.msra.mxu0 0.0
  %503 = vmatprep.subr.mxu0 0.0
  %504 = vmatpush1.msra.mxu0 0.0
  %505 = vmatprep.subr.mxu0 0.0
  %506 = vmatpush1.msra.mxu0 0.0
  %507 = vmatprep.subr.mxu0 0.0
  %508 = vmatpush1.msra.mxu0 0.0
  %509 = vmatprep.subr.mxu0 0.0
  %510 = vmatpush1.msra.mxu0 0.0
  %511 = vmatprep.subr.mxu0 0.0
  %512 = vmatpush1.msra.mxu0 0.0
  %513 = vmatprep.subr.mxu0 0.0
  %514 = vmatpush1.msra.mxu0 0.0
  %515 = vmatprep.subr.mxu0 0.0
  %516 = vmatpush1.msra.mxu0 0.0
  %517 = vmatprep.subr.mxu0 0.0
  %518 = vmatpush1.msra.mxu0 0.0
  %519 = vmatprep.subr.mxu0 0.0
  %520 = vmatpush1.msra.mxu0 0.0
  %521 = vmatprep.subr.mxu0 0.0
  %522 = vmatpush1.msra.mxu0 0.0
  %523 = vmatprep.subr.mxu0 0.0
  %524 = vmatpush1.msra.mxu0 0.0
  %525 = vmatprep.subr.mxu0 0.0
  %526 = vmatpush1.msra.mxu0 0.0
  %527 = vmatprep.subr.mxu0 0.0
  %528 = vmatpush1.msra.mxu0 0.0
  %529 = vmatprep.subr.mxu0 0.0
  %530 = vmatpush1.msra.mxu0 0.0
  %531 = vmatprep.subr.mxu0 0.0
  %532 = vmatpush1.msra.mxu0 0.0
  %533 = vmatprep.subr.mxu0 0.0
  %534 = vmatpush1.msra.mxu0 0.0
  %535 = vmatprep.subr.mxu0 0.0
  %536 = vmatpush1.msra.mxu0 0.0
  %537 = vmatprep.subr.mxu0 0.0
  %538 = vmatpush1.msra.mxu0 0.0
  %539 = vmatprep.subr.mxu0 0.0
  %540 = vmatpush1.msra.mxu0 0.0
  %541 = vmatprep.subr.mxu0 0.0
  %542 = vmatpush1.msra.mxu0 0.0
  %543 = vmatprep.subr.mxu0 0.0
  %544 = vmatpush1.msra.mxu0 0.0
  %545 = vmatprep.subr.mxu0 0.0
  %546 = vmatpush1.msra.mxu0 0.0
  %547 = vmatprep.subr.mxu0 0.0
  %548 = vmatpush1.msra.mxu0 0.0
  %549 = vmatprep.subr.mxu0 0.0
  %550 = vmatpush1.msra.mxu0 0.0
  %551 = vmatprep.subr.mxu0 0.0
  %552 = vmatpush1.msra.mxu0 0.0
  %553 = vmatprep.subr.mxu0 0.0
  %554 = vmatpush1.msra.mxu0 0.0
  %555 = vmatprep.subr.mxu0 0.0
  %556 = vmatpush1.msra.mxu0 0.0
  %557 = vmatprep.mubr.f32.mxu0 0.0
  %558 = vmatmul.mubr.f32.gmra.mrb[0].mxu0 %v491
  %v559 = vpop.f32.mrb[0].mxu0
  %v560 = vadd.f32 0.0, %v559
  %v561 = vpop.f32.mrb[0].mxu0
  %562 = vdwg.mxu0
  %v564 = vrot.slane %v560, 4
  %v566 = vadd.f32 %v249, %v564
  %v567 = vxor.u32 %v566, 2147483648
  %v568 = vmul.f32 %v567, 1.442695
  %v569 = vpow.pop %v568
  %v570 = vadd.f32 %v569, 1.0
  %v571 = vrcp.pop %v570
  %v572 = vmul.f32 1.0, %v571
  %v573 = vadd.f32 %v560, %v349
  %v575 = vrot.slane %v573, 4
  %576 = vrot.lane.b32.xlu0 %v575, 64
  %v577 = vpop.permute.xlu0 %576
  %v579 = vmul.f32 %v572, %v577
  %581 = vrot.lane.b32.xlu0 %v579, 64
  %v582 = vpop.permute.xlu0 %581
  %v584 = vadd.f32 %v249, %v582
  %v585 = vtanh.pop %v584
  %v586 = vsub.f32 1.0, %v572
  %588 = vrot.lane.b32.xlu0 %v585, 96
  %v589 = vpop.permute.xlu0 %588
  %v591 = vmul.f32 %v586, %v589
  %v592 = vrot.slane %v481, 6
  %v594 = vmul.f32 %v572, %v592
  %v595 = vadd.f32 %v591, %v594
  %597 = vrot.lane.b32.xlu0 %v595, 96
  %v598 = vpop.permute.xlu0 %597
  %vm600 = vcmask 259076
  %601 = vst.msk [vmem:[#allocation2] sm:$0x30] %vm600, %v598
  %v602 = vrot.slane %v595, 4
  %603 = vrot.lane.b32.xlu0 %v602, 96
  %v604 = vpop.permute.xlu0 %603
  %v605 = vsel %vm267, %v604, 0
  %607 = vmatprep.subr.mxu0 0.0
  %608 = vmatpush1.msra.mxu0 %v257
  %609 = vmatprep.subr.mxu0 0.0
  %610 = vmatpush1.msra.mxu0 %v258
  %611 = vmatprep.subr.mxu0 0.0
  %612 = vmatpush1.msra.mxu0 %v259
  %613 = vmatprep.subr.mxu0 0.0
  %614 = vmatpush1.msra.mxu0 %v260
  %615 = vmatprep.subr.mxu0 0.0
  %616 = vmatpush1.msra.mxu0 0.0
  %617 = vmatprep.subr.mxu0 0.0
  %618 = vmatpush1.msra.mxu0 0.0
  %619 = vmatprep.subr.mxu0 0.0
  %620 = vmatpush1.msra.mxu0 0.0
  %621 = vmatprep.subr.mxu0 0.0
  %622 = vmatpush1.msra.mxu0 0.0
  %623 = vmatprep.subr.mxu0 0.0
  %624 = vmatpush1.msra.mxu0 0.0
  %625 = vmatprep.subr.mxu0 0.0
  %626 = vmatpush1.msra.mxu0 0.0
  %627 = vmatprep.subr.mxu0 0.0
  %628 = vmatpush1.msra.mxu0 0.0
  %629 = vmatprep.subr.mxu0 0.0
  %630 = vmatpush1.msra.mxu0 0.0
  %631 = vmatprep.subr.mxu0 0.0
  %632 = vmatpush1.msra.mxu0 0.0
  %633 = vmatprep.subr.mxu0 0.0
  %634 = vmatpush1.msra.mxu0 0.0
  %635 = vmatprep.subr.mxu0 0.0
  %636 = vmatpush1.msra.mxu0 0.0
  %637 = vmatprep.subr.mxu0 0.0
  %638 = vmatpush1.msra.mxu0 0.0
  %639 = vmatprep.subr.mxu0 0.0
  %640 = vmatpush1.msra.mxu0 0.0
  %641 = vmatprep.subr.mxu0 0.0
  %642 = vmatpush1.msra.mxu0 0.0
  %643 = vmatprep.subr.mxu0 0.0
  %644 = vmatpush1.msra.mxu0 0.0
  %645 = vmatprep.subr.mxu0 0.0
  %646 = vmatpush1.msra.mxu0 0.0
  %647 = vmatprep.subr.mxu0 0.0
  %648 = vmatpush1.msra.mxu0 0.0
  %649 = vmatprep.subr.mxu0 0.0
  %650 = vmatpush1.msra.mxu0 0.0
  %651 = vmatprep.subr.mxu0 0.0
  %652 = vmatpush1.msra.mxu0 0.0
  %653 = vmatprep.subr.mxu0 0.0
  %654 = vmatpush1.msra.mxu0 0.0
  %655 = vmatprep.subr.mxu0 0.0
  %656 = vmatpush1.msra.mxu0 0.0
  %657 = vmatprep.subr.mxu0 0.0
  %658 = vmatpush1.msra.mxu0 0.0
  %659 = vmatprep.subr.mxu0 0.0
  %660 = vmatpush1.msra.mxu0 0.0
  %661 = vmatprep.subr.mxu0 0.0
  %662 = vmatpush1.msra.mxu0 0.0
  %663 = vmatprep.subr.mxu0 0.0
  %664 = vmatpush1.msra.mxu0 0.0
  %665 = vmatprep.subr.mxu0 0.0
  %666 = vmatpush1.msra.mxu0 0.0
  %667 = vmatprep.subr.mxu0 0.0
  %668 = vmatpush1.msra.mxu0 0.0
  %669 = vmatprep.subr.mxu0 0.0
  %670 = vmatpush1.msra.mxu0 0.0
  %671 = vmatprep.mubr.f32.mxu0 0.0
  %672 = vmatmul.mubr.f32.gmra.mrb[0].mxu0 %v605
  %v673 = vpop.f32.mrb[0].mxu0
  %v674 = vadd.f32 0.0, %v673
  %v675 = vpop.f32.mrb[0].mxu0
  %676 = vdwg.mxu0
  %v678 = vrot.slane %v674, 2
  %v680 = vadd.f32 %v249, %v678
  %v681 = vxor.u32 %v680, 2147483648
  %v682 = vmul.f32 %v681, 1.442695
  %v683 = vpow.pop %v682
  %v684 = vadd.f32 %v683, 1.0
  %v685 = vrcp.pop %v684
  %v686 = vmul.f32 1.0, %v685
  %v687 = vadd.f32 %v674, %v349
  %v689 = vrot.slane %v687, 2
  %690 = vrot.lane.b32.xlu0 %v689, 64
  %v691 = vpop.permute.xlu0 %690
  %v693 = vmul.f32 %v686, %v691
  %695 = vrot.lane.b32.xlu0 %v693, 64
  %v696 = vpop.permute.xlu0 %695
  %v698 = vadd.f32 %v249, %v696
  %v699 = vtanh.pop %v698
  %v700 = vsub.f32 1.0, %v686
  %702 = vrot.lane.b32.xlu0 %v699, 96
  %v703 = vpop.permute.xlu0 %702
  %v705 = vmul.f32 %v700, %v703
  %v706 = vrot.slane %v595, 6
  %v708 = vmul.f32 %v686, %v706
  %v709 = vadd.f32 %v705, %v708
  %711 = vrot.lane.b32.xlu0 %v709, 96
  %v712 = vpop.permute.xlu0 %711
  %vm714 = vcmask 261126
  %715 = vst.msk [vmem:[#allocation2] sm:$0xc0] %vm714, %v712
  %v716 = vrot.slane %v709, 6
  %717 = vrot.lane.b32.xlu0 %v716, 96
  %v718 = vpop.permute.xlu0 %717
  %v719 = vsel %vm267, %v718, 0
  %721 = vmatprep.subr.mxu0 0.0
  %722 = vmatpush1.msra.mxu0 %v257
  %723 = vmatprep.subr.mxu0 0.0
  %724 = vmatpush1.msra.mxu0 %v258
  %725 = vmatprep.subr.mxu0 0.0
  %726 = vmatpush1.msra.mxu0 %v259
  %727 = vmatprep.subr.mxu0 0.0
  %728 = vmatpush1.msra.mxu0 %v260
  %729 = vmatprep.subr.mxu0 0.0
  %730 = vmatpush1.msra.mxu0 0.0
  %731 = vmatprep.subr.mxu0 0.0
  %732 = vmatpush1.msra.mxu0 0.0
  %733 = vmatprep.subr.mxu0 0.0
  %734 = vmatpush1.msra.mxu0 0.0
  %735 = vmatprep.subr.mxu0 0.0
  %736 = vmatpush1.msra.mxu0 0.0
  %737 = vmatprep.subr.mxu0 0.0
  %738 = vmatpush1.msra.mxu0 0.0
  %739 = vmatprep.subr.mxu0 0.0
  %740 = vmatpush1.msra.mxu0 0.0
  %741 = vmatprep.subr.mxu0 0.0
  %742 = vmatpush1.msra.mxu0 0.0
  %743 = vmatprep.subr.mxu0 0.0
  %744 = vmatpush1.msra.mxu0 0.0
  %745 = vmatprep.subr.mxu0 0.0
  %746 = vmatpush1.msra.mxu0 0.0
  %747 = vmatprep.subr.mxu0 0.0
  %748 = vmatpush1.msra.mxu0 0.0
  %749 = vmatprep.subr.mxu0 0.0
  %750 = vmatpush1.msra.mxu0 0.0
  %751 = vmatprep.subr.mxu0 0.0
  %752 = vmatpush1.msra.mxu0 0.0
  %753 = vmatprep.subr.mxu0 0.0
  %754 = vmatpush1.msra.mxu0 0.0
  %755 = vmatprep.subr.mxu0 0.0
  %756 = vmatpush1.msra.mxu0 0.0
  %757 = vmatprep.subr.mxu0 0.0
  %758 = vmatpush1.msra.mxu0 0.0
  %759 = vmatprep.subr.mxu0 0.0
  %760 = vmatpush1.msra.mxu0 0.0
  %761 = vmatprep.subr.mxu0 0.0
  %762 = vmatpush1.msra.mxu0 0.0
  %763 = vmatprep.subr.mxu0 0.0
  %764 = vmatpush1.msra.mxu0 0.0
  %765 = vmatprep.subr.mxu0 0.0
  %766 = vmatpush1.msra.mxu0 0.0
  %767 = vmatprep.subr.mxu0 0.0
  %768 = vmatpush1.msra.mxu0 0.0
  %769 = vmatprep.subr.mxu0 0.0
  %770 = vmatpush1.msra.mxu0 0.0
  %771 = vmatprep.subr.mxu0 0.0
  %772 = vmatpush1.msra.mxu0 0.0
  %773 = vmatprep.subr.mxu0 0.0
  %774 = vmatpush1.msra.mxu0 0.0
  %775 = vmatprep.subr.mxu0 0.0
  %776 = vmatpush1.msra.mxu0 0.0
  %777 = vmatprep.subr.mxu0 0.0
  %778 = vmatpush1.msra.mxu0 0.0
  %779 = vmatprep.subr.mxu0 0.0
  %780 = vmatpush1.msra.mxu0 0.0
  %781 = vmatprep.subr.mxu0 0.0
  %782 = vmatpush1.msra.mxu0 0.0
  %783 = vmatprep.subr.mxu0 0.0
  %784 = vmatpush1.msra.mxu0 0.0
  %785 = vmatprep.mubr.f32.mxu0 0.0
  %786 = vmatmul.mubr.f32.gmra.mrb[0].mxu0 %v719
  %v787 = vpop.f32.mrb[0].mxu0
  %v788 = vadd.f32 0.0, %v787
  %v789 = vpop.f32.mrb[0].mxu0
  %790 = vdwg.mxu0
  %v791 = vadd.f32 %v254, %v788
  %v792 = vxor.u32 %v791, 2147483648
  %v793 = vmul.f32 %v792, 1.442695
  %v794 = vpow.pop %v793
  %v795 = vadd.f32 %v794, 1.0
  %v796 = vrcp.pop %v795
  %v797 = vmul.f32 1.0, %v796
  %v798 = vadd.f32 %v788, %v349
  %800 = vrot.lane.b32.xlu0 %v798, 64
  %v801 = vpop.permute.xlu0 %800
  %v803 = vmul.f32 %v797, %v801
  %805 = vrot.lane.b32.xlu0 %v803, 64
  %v806 = vpop.permute.xlu0 %805
  %v808 = vadd.f32 %v254, %v806
  %v809 = vtanh.pop %v808
  %v810 = vsub.f32 1.0, %v797
  %812 = vrot.lane.b32.xlu0 %v809, 96
  %v813 = vpop.permute.xlu0 %812
  %v815 = vmul.f32 %v810, %v813
  %v817 = vmul.f32 %v797, %v716
  %v818 = vadd.f32 %v815, %v817
  %820 = vrot.lane.b32.xlu0 %v818, 96
  %v821 = vpop.permute.xlu0 %820
  %823 = vst.msk [vmem:[#allocation2 + $0x8] sm:$0x3] %vm375, %v821
  %v824 = vsel %vm267, %v821, 0
  %826 = vmatprep.subr.mxu0 0.0
  %827 = vmatpush1.msra.mxu0 %v257
  %828 = vmatprep.subr.mxu0 0.0
  %829 = vmatpush1.msra.mxu0 %v258
  %830 = vmatprep.subr.mxu0 0.0
  %831 = vmatpush1.msra.mxu0 %v259
  %832 = vmatprep.subr.mxu0 0.0
  %833 = vmatpush1.msra.mxu0 %v260
  %834 = vmatprep.subr.mxu0 0.0
  %835 = vmatpush1.msra.mxu0 0.0
  %836 = vmatprep.subr.mxu0 0.0
  %837 = vmatpush1.msra.mxu0 0.0
  %838 = vmatprep.subr.mxu0 0.0
  %839 = vmatpush1.msra.mxu0 0.0
  %840 = vmatprep.subr.mxu0 0.0
  %841 = vmatpush1.msra.mxu0 0.0
  %842 = vmatprep.subr.mxu0 0.0
  %843 = vmatpush1.msra.mxu0 0.0
  %844 = vmatprep.subr.mxu0 0.0
  %845 = vmatpush1.msra.mxu0 0.0
  %846 = vmatprep.subr.mxu0 0.0
  %847 = vmatpush1.msra.mxu0 0.0
  %848 = vmatprep.subr.mxu0 0.0
  %849 = vmatpush1.msra.mxu0 0.0
  %850 = vmatprep.subr.mxu0 0.0
  %851 = vmatpush1.msra.mxu0 0.0
  %852 = vmatprep.subr.mxu0 0.0
  %853 = vmatpush1.msra.mxu0 0.0
  %854 = vmatprep.subr.mxu0 0.0
  %855 = vmatpush1.msra.mxu0 0.0
  %856 = vmatprep.subr.mxu0 0.0
  %857 = vmatpush1.msra.mxu0 0.0
  %858 = vmatprep.subr.mxu0 0.0
  %859 = vmatpush1.msra.mxu0 0.0
  %860 = vmatprep.subr.mxu0 0.0
  %861 = vmatpush1.msra.mxu0 0.0
  %862 = vmatprep.subr.mxu0 0.0
  %863 = vmatpush1.msra.mxu0 0.0
  %864 = vmatprep.subr.mxu0 0.0
  %865 = vmatpush1.msra.mxu0 0.0
  %866 = vmatprep.subr.mxu0 0.0
  %867 = vmatpush1.msra.mxu0 0.0
  %868 = vmatprep.subr.mxu0 0.0
  %869 = vmatpush1.msra.mxu0 0.0
  %870 = vmatprep.subr.mxu0 0.0
  %871 = vmatpush1.msra.mxu0 0.0
  %872 = vmatprep.subr.mxu0 0.0
  %873 = vmatpush1.msra.mxu0 0.0
  %874 = vmatprep.subr.mxu0 0.0
  %875 = vmatpush1.msra.mxu0 0.0
  %876 = vmatprep.subr.mxu0 0.0
  %877 = vmatpush1.msra.mxu0 0.0
  %878 = vmatprep.subr.mxu0 0.0
  %879 = vmatpush1.msra.mxu0 0.0
  %880 = vmatprep.subr.mxu0 0.0
  %881 = vmatpush1.msra.mxu0 0.0
  %882 = vmatprep.subr.mxu0 0.0
  %883 = vmatpush1.msra.mxu0 0.0
  %884 = vmatprep.subr.mxu0 0.0
  %885 = vmatpush1.msra.mxu0 0.0
  %886 = vmatprep.subr.mxu0 0.0
  %887 = vmatpush1.msra.mxu0 0.0
  %888 = vmatprep.subr.mxu0 0.0
  %889 = vmatpush1.msra.mxu0 0.0
  %890 = vmatprep.mubr.f32.mxu0 0.0
  %891 = vmatmul.mubr.f32.gmra.mrb[0].mxu0 %v824
  %v892 = vpop.f32.mrb[0].mxu0
  %v893 = vadd.f32 0.0, %v892
  %v894 = vpop.f32.mrb[0].mxu0
  %895 = vdwg.mxu0
  %v897 = vrot.slane %v893, 6
  %v899 = vadd.f32 %v254, %v897
  %v900 = vxor.u32 %v899, 2147483648
  %v901 = vmul.f32 %v900, 1.442695
  %v902 = vpow.pop %v901
  %v903 = vadd.f32 %v902, 1.0
  %v904 = vrcp.pop %v903
  %v905 = vmul.f32 1.0, %v904
  %v906 = vadd.f32 %v893, %v349
  %v908 = vrot.slane %v906, 6
  %909 = vrot.lane.b32.xlu0 %v908, 64
  %v910 = vpop.permute.xlu0 %909
  %v912 = vmul.f32 %v905, %v910
  %914 = vrot.lane.b32.xlu0 %v912, 64
  %v915 = vpop.permute.xlu0 %914
  %v917 = vadd.f32 %v254, %v915
  %v918 = vtanh.pop %v917
  %v919 = vsub.f32 1.0, %v905
  %921 = vrot.lane.b32.xlu0 %v918, 96
  %v922 = vpop.permute.xlu0 %921
  %v924 = vmul.f32 %v919, %v922
  %v925 = vrot.slane %v818, 6
  %v927 = vmul.f32 %v905, %v925
  %v928 = vadd.f32 %v924, %v927
  %930 = vrot.lane.b32.xlu0 %v928, 96
  %v931 = vpop.permute.xlu0 %930
  %933 = vst.msk [vmem:[#allocation2 + $0x8] sm:$0xc] %vm486, %v931
  %v934 = vrot.slane %v928, 2
  %935 = vrot.lane.b32.xlu0 %v934, 96
  %v936 = vpop.permute.xlu0 %935
  %v937 = vsel %vm267, %v936, 0
  %939 = vmatprep.subr.mxu0 0.0
  %940 = vmatpush1.msra.mxu0 %v257
  %941 = vmatprep.subr.mxu0 0.0
  %942 = vmatpush1.msra.mxu0 %v258
  %943 = vmatprep.subr.mxu0 0.0
  %944 = vmatpush1.msra.mxu0 %v259
  %945 = vmatprep.subr.mxu0 0.0
  %946 = vmatpush1.msra.mxu0 %v260
  %947 = vmatprep.subr.mxu0 0.0
  %948 = vmatpush1.msra.mxu0 0.0
  %949 = vmatprep.subr.mxu0 0.0
  %950 = vmatpush1.msra.mxu0 0.0
  %951 = vmatprep.subr.mxu0 0.0
  %952 = vmatpush1.msra.mxu0 0.0
  %953 = vmatprep.subr.mxu0 0.0
  %954 = vmatpush1.msra.mxu0 0.0
  %955 = vmatprep.subr.mxu0 0.0
  %956 = vmatpush1.msra.mxu0 0.0
  %957 = vmatprep.subr.mxu0 0.0
  %958 = vmatpush1.msra.mxu0 0.0
  %959 = vmatprep.subr.mxu0 0.0
  %960 = vmatpush1.msra.mxu0 0.0
  %961 = vmatprep.subr.mxu0 0.0
  %962 = vmatpush1.msra.mxu0 0.0
  %963 = vmatprep.subr.mxu0 0.0
  %964 = vmatpush1.msra.mxu0 0.0
  %965 = vmatprep.subr.mxu0 0.0
  %966 = vmatpush1.msra.mxu0 0.0
  %967 = vmatprep.subr.mxu0 0.0
  %968 = vmatpush1.msra.mxu0 0.0
  %969 = vmatprep.subr.mxu0 0.0
  %970 = vmatpush1.msra.mxu0 0.0
  %971 = vmatprep.subr.mxu0 0.0
  %972 = vmatpush1.msra.mxu0 0.0
  %973 = vmatprep.subr.mxu0 0.0
  %974 = vmatpush1.msra.mxu0 0.0
  %975 = vmatprep.subr.mxu0 0.0
  %976 = vmatpush1.msra.mxu0 0.0
  %977 = vmatprep.subr.mxu0 0.0
  %978 = vmatpush1.msra.mxu0 0.0
  %979 = vmatprep.subr.mxu0 0.0
  %980 = vmatpush1.msra.mxu0 0.0
  %981 = vmatprep.subr.mxu0 0.0
  %982 = vmatpush1.msra.mxu0 0.0
  %983 = vmatprep.subr.mxu0 0.0
  %984 = vmatpush1.msra.mxu0 0.0
  %985 = vmatprep.subr.mxu0 0.0
  %986 = vmatpush1.msra.mxu0 0.0
  %987 = vmatprep.subr.mxu0 0.0
  %988 = vmatpush1.msra.mxu0 0.0
  %989 = vmatprep.subr.mxu0 0.0
  %990 = vmatpush1.msra.mxu0 0.0
  %991 = vmatprep.subr.mxu0 0.0
  %992 = vmatpush1.msra.mxu0 0.0
  %993 = vmatprep.subr.mxu0 0.0
  %994 = vmatpush1.msra.mxu0 0.0
  %995 = vmatprep.subr.mxu0 0.0
  %996 = vmatpush1.msra.mxu0 0.0
  %997 = vmatprep.subr.mxu0 0.0
  %998 = vmatpush1.msra.mxu0 0.0
  %999 = vmatprep.subr.mxu0 0.0
  %1000 = vmatpush1.msra.mxu0 0.0
  %1001 = vmatprep.subr.mxu0 0.0
  %1002 = vmatpush1.msra.mxu0 0.0
  %1003 = vmatprep.mubr.f32.mxu0 0.0
  %1004 = vmatmul.mubr.f32.gmra.mrb[0].mxu0 %v937
  %v1005 = vpop.f32.mrb[0].mxu0
  %v1006 = vadd.f32 0.0, %v1005
  %v1007 = vpop.f32.mrb[0].mxu0
  %1008 = vdwg.mxu0
  %v1010 = vrot.slane %v1006, 4
  %v1012 = vadd.f32 %v254, %v1010
  %v1013 = vxor.u32 %v1012, 2147483648
  %v1014 = vmul.f32 %v1013, 1.442695
  %v1015 = vpow.pop %v1014
  %v1016 = vadd.f32 %v1015, 1.0
  %v1017 = vrcp.pop %v1016
  %v1018 = vmul.f32 1.0, %v1017
  %v1019 = vadd.f32 %v1006, %v349
  %v1021 = vrot.slane %v1019, 4
  %1022 = vrot.lane.b32.xlu0 %v1021, 64
  %v1023 = vpop.permute.xlu0 %1022
  %v1025 = vmul.f32 %v1018, %v1023
  %1027 = vrot.lane.b32.xlu0 %v1025, 64
  %v1028 = vpop.permute.xlu0 %1027
  %v1030 = vadd.f32 %v254, %v1028
  %v1031 = vtanh.pop %v1030
  %v1032 = vsub.f32 1.0, %v1018
  %1034 = vrot.lane.b32.xlu0 %v1031, 96
  %v1035 = vpop.permute.xlu0 %1034
  %v1037 = vmul.f32 %v1032, %v1035
  %v1038 = vrot.slane %v928, 6
  %v1040 = vmul.f32 %v1018, %v1038
  %v1041 = vadd.f32 %v1037, %v1040
  %1043 = vrot.lane.b32.xlu0 %v1041, 96
  %v1044 = vpop.permute.xlu0 %1043
  %1046 = vst.msk [vmem:[#allocation2 + $0x8] sm:$0x30] %vm600, %v1044
  %v1047 = vrot.slane %v1041, 4
  %1048 = vrot.lane.b32.xlu0 %v1047, 96
  %v1049 = vpop.permute.xlu0 %1048
  %v1050 = vsel %vm267, %v1049, 0
  %1052 = vmatprep.subr.mxu0 0.0
  %1053 = vmatpush1.msra.mxu0 %v257
  %1054 = vmatprep.subr.mxu0 0.0
  %1055 = vmatpush1.msra.mxu0 %v258
  %1056 = vmatprep.subr.mxu0 0.0
  %1057 = vmatpush1.msra.mxu0 %v259
  %1058 = vmatprep.subr.mxu0 0.0
  %1059 = vmatpush1.msra.mxu0 %v260
  %1060 = vmatprep.subr.mxu0 0.0
  %1061 = vmatpush1.msra.mxu0 0.0
  %1062 = vmatprep.subr.mxu0 0.0
  %1063 = vmatpush1.msra.mxu0 0.0
  %1064 = vmatprep.subr.mxu0 0.0
  %1065 = vmatpush1.msra.mxu0 0.0
  %1066 = vmatprep.subr.mxu0 0.0
  %1067 = vmatpush1.msra.mxu0 0.0
  %1068 = vmatprep.subr.mxu0 0.0
  %1069 = vmatpush1.msra.mxu0 0.0
  %1070 = vmatprep.subr.mxu0 0.0
  %1071 = vmatpush1.msra.mxu0 0.0
  %1072 = vmatprep.subr.mxu0 0.0
  %1073 = vmatpush1.msra.mxu0 0.0
  %1074 = vmatprep.subr.mxu0 0.0
  %1075 = vmatpush1.msra.mxu0 0.0
  %1076 = vmatprep.subr.mxu0 0.0
  %1077 = vmatpush1.msra.mxu0 0.0
  %1078 = vmatprep.subr.mxu0 0.0
  %1079 = vmatpush1.msra.mxu0 0.0
  %1080 = vmatprep.subr.mxu0 0.0
  %1081 = vmatpush1.msra.mxu0 0.0
  %1082 = vmatprep.subr.mxu0 0.0
  %1083 = vmatpush1.msra.mxu0 0.0
  %1084 = vmatprep.subr.mxu0 0.0
  %1085 = vmatpush1.msra.mxu0 0.0
  %1086 = vmatprep.subr.mxu0 0.0
  %1087 = vmatpush1.msra.mxu0 0.0
  %1088 = vmatprep.subr.mxu0 0.0
  %1089 = vmatpush1.msra.mxu0 0.0
  %1090 = vmatprep.subr.mxu0 0.0
  %1091 = vmatpush1.msra.mxu0 0.0
  %1092 = vmatprep.subr.mxu0 0.0
  %1093 = vmatpush1.msra.mxu0 0.0
  %1094 = vmatprep.subr.mxu0 0.0
  %1095 = vmatpush1.msra.mxu0 0.0
  %1096 = vmatprep.subr.mxu0 0.0
  %1097 = vmatpush1.msra.mxu0 0.0
  %1098 = vmatprep.subr.mxu0 0.0
  %1099 = vmatpush1.msra.mxu0 0.0
  %1100 = vmatprep.subr.mxu0 0.0
  %1101 = vmatpush1.msra.mxu0 0.0
  %1102 = vmatprep.subr.mxu0 0.0
  %1103 = vmatpush1.msra.mxu0 0.0
  %1104 = vmatprep.subr.mxu0 0.0
  %1105 = vmatpush1.msra.mxu0 0.0
  %1106 = vmatprep.subr.mxu0 0.0
  %1107 = vmatpush1.msra.mxu0 0.0
  %1108 = vmatprep.subr.mxu0 0.0
  %1109 = vmatpush1.msra.mxu0 0.0
  %1110 = vmatprep.subr.mxu0 0.0
  %1111 = vmatpush1.msra.mxu0 0.0
  %1112 = vmatprep.subr.mxu0 0.0
  %1113 = vmatpush1.msra.mxu0 0.0
  %1114 = vmatprep.subr.mxu0 0.0
  %1115 = vmatpush1.msra.mxu0 0.0
  %1116 = vmatprep.mubr.f32.mxu0 0.0
  %1117 = vmatmul.mubr.f32.gmra.mrb[0].mxu0 %v1050
  %v1118 = vpop.f32.mrb[0].mxu0
  %v1119 = vadd.f32 0.0, %v1118
  %v1120 = vpop.f32.mrb[0].mxu0
  %1121 = vdwg.mxu0
  %v1123 = vrot.slane %v1119, 2
  %v1125 = vadd.f32 %v254, %v1123
  %v1126 = vxor.u32 %v1125, 2147483648
  %v1127 = vmul.f32 %v1126, 1.442695
  %v1128 = vpow.pop %v1127
  %v1129 = vadd.f32 %v1128, 1.0
  %v1130 = vrcp.pop %v1129
  %v1131 = vmul.f32 1.0, %v1130
  %v1132 = vadd.f32 %v1119, %v349
  %v1134 = vrot.slane %v1132, 2
  %1135 = vrot.lane.b32.xlu0 %v1134, 64
  %v1136 = vpop.permute.xlu0 %1135
  %v1138 = vmul.f32 %v1131, %v1136
  %1140 = vrot.lane.b32.xlu0 %v1138, 64
  %v1141 = vpop.permute.xlu0 %1140
  %v1143 = vadd.f32 %v254, %v1141
  %v1144 = vtanh.pop %v1143
  %v1145 = vsub.f32 1.0, %v1131
  %1147 = vrot.lane.b32.xlu0 %v1144, 96
  %v1148 = vpop.permute.xlu0 %1147
  %v1150 = vmul.f32 %v1145, %v1148
  %v1151 = vrot.slane %v1041, 6
  %v1153 = vmul.f32 %v1131, %v1151
  %v1154 = vadd.f32 %v1150, %v1153
  %1156 = vrot.lane.b32.xlu0 %v1154, 96
  %v1157 = vpop.permute.xlu0 %1156
  %1159 = vst.msk [vmem:[#allocation2 + $0x8] sm:$0xc0] %vm714, %v1157
  %v1160 = vld [vmem:[#allocation2] sm:$0xff]
  %v1161 = vld [vmem:[#allocation2 + $0x8] sm:$0xff]
  %v1162 = vld [vmem:[%s5] sm:$0xff]
  %v1163 = vld [vmem:[%s5 + $0x8] sm:$0xff]
  %v1164 = vld [vmem:[%s5 + $0x10] sm:$0xff]
  %v1165 = vld [vmem:[%s5 + $0x18] sm:$0xff]
  %v1166 = vld [vmem:[%s6] sm:$0x1]
  %v1168 = vlaneseq
  %v1169 = vshrl.u32 %v1168, 7
  %v1170 = vsub.s32 0, %v1169
  %v1171 = vrot.slane %v1166, %v1170
  %v1174 = vsel %vm267, %v1160, 0
  %v1177 = vsel %vm267, %v1161, 0
  %1179 = vmatprep.subr.mxu0 0.0
  %1180 = vmatpush1.msra.mxu0 %v1162
  %1181 = vmatprep.subr.mxu0 0.0
  %1182 = vmatpush1.msra.mxu0 %v1163
  %1183 = vmatprep.subr.mxu0 0.0
  %1184 = vmatpush1.msra.mxu0 %v1164
  %1185 = vmatprep.subr.mxu0 0.0
  %1186 = vmatpush1.msra.mxu0 %v1165
  %1187 = vmatprep.subr.mxu0 0.0
  %1188 = vmatpush1.msra.mxu0 0.0
  %1189 = vmatprep.subr.mxu0 0.0
  %1190 = vmatpush1.msra.mxu0 0.0
  %1191 = vmatprep.subr.mxu0 0.0
  %1192 = vmatpush1.msra.mxu0 0.0
  %1193 = vmatprep.subr.mxu0 0.0
  %1194 = vmatpush1.msra.mxu0 0.0
  %1195 = vmatprep.subr.mxu0 0.0
  %1196 = vmatpush1.msra.mxu0 0.0
  %1197 = vmatprep.subr.mxu0 0.0
  %1198 = vmatpush1.msra.mxu0 0.0
  %1199 = vmatprep.subr.mxu0 0.0
  %1200 = vmatpush1.msra.mxu0 0.0
  %1201 = vmatprep.subr.mxu0 0.0
  %1202 = vmatpush1.msra.mxu0 0.0
  %1203 = vmatprep.subr.mxu0 0.0
  %1204 = vmatpush1.msra.mxu0 0.0
  %1205 = vmatprep.subr.mxu0 0.0
  %1206 = vmatpush1.msra.mxu0 0.0
  %1207 = vmatprep.subr.mxu0 0.0
  %1208 = vmatpush1.msra.mxu0 0.0
  %1209 = vmatprep.subr.mxu0 0.0
  %1210 = vmatpush1.msra.mxu0 0.0
  %1211 = vmatprep.subr.mxu0 0.0
  %1212 = vmatpush1.msra.mxu0 0.0
  %1213 = vmatprep.subr.mxu0 0.0
  %1214 = vmatpush1.msra.mxu0 0.0
  %1215 = vmatprep.subr.mxu0 0.0
  %1216 = vmatpush1.msra.mxu0 0.0
  %1217 = vmatprep.subr.mxu0 0.0
  %1218 = vmatpush1.msra.mxu0 0.0
  %1219 = vmatprep.subr.mxu0 0.0
  %1220 = vmatpush1.msra.mxu0 0.0
  %1221 = vmatprep.subr.mxu0 0.0
  %1222 = vmatpush1.msra.mxu0 0.0
  %1223 = vmatprep.subr.mxu0 0.0
  %1224 = vmatpush1.msra.mxu0 0.0
  %1225 = vmatprep.subr.mxu0 0.0
  %1226 = vmatpush1.msra.mxu0 0.0
  %1227 = vmatprep.subr.mxu0 0.0
  %1228 = vmatpush1.msra.mxu0 0.0
  %1229 = vmatprep.subr.mxu0 0.0
  %1230 = vmatpush1.msra.mxu0 0.0
  %1231 = vmatprep.subr.mxu0 0.0
  %1232 = vmatpush1.msra.mxu0 0.0
  %1233 = vmatprep.subr.mxu0 0.0
  %1234 = vmatpush1.msra.mxu0 0.0
  %1235 = vmatprep.subr.mxu0 0.0
  %1236 = vmatpush1.msra.mxu0 0.0
  %1237 = vmatprep.subr.mxu0 0.0
  %1238 = vmatpush1.msra.mxu0 0.0
  %1239 = vmatprep.subr.mxu0 0.0
  %1240 = vmatpush1.msra.mxu0 0.0
  %1241 = vmatprep.subr.mxu0 0.0
  %1242 = vmatpush1.msra.mxu0 0.0
  %1243 = vmatprep.mubr.f32.mxu0 0.0
  %1244 = vmatmul.mubr.f32.gmra.mrb[0].mxu0 %v1174
  %v1245 = vpop.f32.mrb[0].mxu0
  %v1246 = vadd.f32 %v1171, %v1245
  %v1247 = vpop.f32.mrb[0].mxu0
  %1248 = vmatprep.mubr.f32.mxu0 0.0
  %1249 = vmatmul.mubr.f32.gmra.mrb[0].mxu0 %v1177
  %v1250 = vpop.f32.mrb[0].mxu0
  %v1251 = vadd.f32 %v1171, %v1250
  %v1252 = vpop.f32.mrb[0].mxu0
  %1253 = vdwg.mxu0
  %v1254 = vld [vmem:[%s7] sm:$0xff]
  %v1255 = vld [vmem:[%s7 + $0x8] sm:$0xff]
  %v1256 = vld [vmem:[%s7 + $0x10] sm:$0xff]
  %v1257 = vld [vmem:[%s7 + $0x18] sm:$0xff]
  %v1258 = vld [vmem:[%s8] sm:$0x1]
  %v1260 = vlaneseq
  %v1261 = vshrl.u32 %v1260, 7
  %v1262 = vsub.s32 0, %v1261
  %v1263 = vrot.slane %v1258, %v1262
  %1264 = vmatprep.subr.mxu0 0.0
  %1265 = vmatpush1.msra.mxu0 %v1254
  %1266 = vmatprep.subr.mxu0 0.0
  %1267 = vmatpush1.msra.mxu0 %v1255
  %1268 = vmatprep.subr.mxu0 0.0
  %1269 = vmatpush1.msra.mxu0 %v1256
  %1270 = vmatprep.subr.mxu0 0.0
  %1271 = vmatpush1.msra.mxu0 %v1257
  %1272 = vmatprep.subr.mxu0 0.0
  %1273 = vmatpush1.msra.mxu0 0.0
  %1274 = vmatprep.subr.mxu0 0.0
  %1275 = vmatpush1.msra.mxu0 0.0
  %1276 = vmatprep.subr.mxu0 0.0
  %1277 = vmatpush1.msra.mxu0 0.0
  %1278 = vmatprep.subr.mxu0 0.0
  %1279 = vmatpush1.msra.mxu0 0.0
  %1280 = vmatprep.subr.mxu0 0.0
  %1281 = vmatpush1.msra.mxu0 0.0
  %1282 = vmatprep.subr.mxu0 0.0
  %1283 = vmatpush1.msra.mxu0 0.0
  %1284 = vmatprep.subr.mxu0 0.0
  %1285 = vmatpush1.msra.mxu0 0.0
  %1286 = vmatprep.subr.mxu0 0.0
  %1287 = vmatpush1.msra.mxu0 0.0
  %1288 = vmatprep.subr.mxu0 0.0
  %1289 = vmatpush1.msra.mxu0 0.0
  %1290 = vmatprep.subr.mxu0 0.0
  %1291 = vmatpush1.msra.mxu0 0.0
  %1292 = vmatprep.subr.mxu0 0.0
  %1293 = vmatpush1.msra.mxu0 0.0
  %1294 = vmatprep.subr.mxu0 0.0
  %1295 = vmatpush1.msra.mxu0 0.0
  %1296 = vmatprep.subr.mxu0 0.0
  %1297 = vmatpush1.msra.mxu0 0.0
  %1298 = vmatprep.subr.mxu0 0.0
  %1299 = vmatpush1.msra.mxu0 0.0
  %1300 = vmatprep.subr.mxu0 0.0
  %1301 = vmatpush1.msra.mxu0 0.0
  %1302 = vmatprep.subr.mxu0 0.0
  %1303 = vmatpush1.msra.mxu0 0.0
  %1304 = vmatprep.subr.mxu0 0.0
  %1305 = vmatpush1.msra.mxu0 0.0
  %1306 = vmatprep.subr.mxu0 0.0
  %1307 = vmatpush1.msra.mxu0 0.0
  %1308 = vmatprep.subr.mxu0 0.0
  %1309 = vmatpush1.msra.mxu0 0.0
  %1310 = vmatprep.subr.mxu0 0.0
  %1311 = vmatpush1.msra.mxu0 0.0
  %1312 = vmatprep.subr.mxu0 0.0
  %1313 = vmatpush1.msra.mxu0 0.0
  %1314 = vmatprep.subr.mxu0 0.0
  %1315 = vmatpush1.msra.mxu0 0.0
  %1316 = vmatprep.subr.mxu0 0.0
  %1317 = vmatpush1.msra.mxu0 0.0
  %1318 = vmatprep.subr.mxu0 0.0
  %1319 = vmatpush1.msra.mxu0 0.0
  %1320 = vmatprep.subr.mxu0 0.0
  %1321 = vmatpush1.msra.mxu0 0.0
  %1322 = vmatprep.subr.mxu0 0.0
  %1323 = vmatpush1.msra.mxu0 0.0
  %1324 = vmatprep.subr.mxu0 0.0
  %1325 = vmatpush1.msra.mxu0 0.0
  %1326 = vmatprep.subr.mxu0 0.0
  %1327 = vmatpush1.msra.mxu0 0.0
  %1328 = vmatprep.mubr.f32.mxu0 0.0
  %1329 = vmatmul.mubr.f32.gmra.mrb[0].mxu0 %v269
  %v1330 = vpop.f32.mrb[0].mxu0
  %v1331 = vadd.f32 0.0, %v1330
  %v1332 = vpop.f32.mrb[0].mxu0
  %1333 = vdwg.mxu0
  %v1334 = vadd.f32 %v1246, %v1331
  %v1335 = vxor.u32 %v1334, 2147483648
  %v1336 = vmul.f32 %v1335, 1.442695
  %v1337 = vpow.pop %v1336
  %v1338 = vadd.f32 %v1337, 1.0
  %v1339 = vrcp.pop %v1338
  %v1340 = vmul.f32 1.0, %v1339
  %1341 = vrot.lane.b32.xlu0 %v1263, 64
  %v1342 = vpop.permute.xlu0 %1341
  %v1344 = vadd.f32 %v1331, %v1342
  %1346 = vrot.lane.b32.xlu0 %v1344, 64
  %v1347 = vpop.permute.xlu0 %1346
  %v1349 = vmul.f32 %v1340, %v1347
  %1351 = vrot.lane.b32.xlu0 %v1349, 64
  %v1352 = vpop.permute.xlu0 %1351
  %v1354 = vadd.f32 %v1246, %v1352
  %v1355 = vtanh.pop %v1354
  %v1356 = vsub.f32 1.0, %v1340
  %1358 = vrot.lane.b32.xlu0 %v1355, 96
  %v1359 = vpop.permute.xlu0 %1358
  %v1361 = vmul.f32 %v1356, %v1359
  %v1362 = vmul.f32 %v1340, 0.0
  %v1363 = vadd.f32 %v1361, %v1362
  %1365 = vrot.lane.b32.xlu0 %v1363, 96
  %v1366 = vpop.permute.xlu0 %1365
  %v1367 = vsel %vm267, %v1366, 0
  %1369 = vmatprep.subr.mxu0 0.0
  %1370 = vmatpush1.msra.mxu0 %v1254
  %1371 = vmatprep.subr.mxu0 0.0
  %1372 = vmatpush1.msra.mxu0 %v1255
  %1373 = vmatprep.subr.mxu0 0.0
  %1374 = vmatpush1.msra.mxu0 %v1256
  %1375 = vmatprep.subr.mxu0 0.0
  %1376 = vmatpush1.msra.mxu0 %v1257
  %1377 = vmatprep.subr.mxu0 0.0
  %1378 = vmatpush1.msra.mxu0 0.0
  %1379 = vmatprep.subr.mxu0 0.0
  %1380 = vmatpush1.msra.mxu0 0.0
  %1381 = vmatprep.subr.mxu0 0.0
  %1382 = vmatpush1.msra.mxu0 0.0
  %1383 = vmatprep.subr.mxu0 0.0
  %1384 = vmatpush1.msra.mxu0 0.0
  %1385 = vmatprep.subr.mxu0 0.0
  %1386 = vmatpush1.msra.mxu0 0.0
  %1387 = vmatprep.subr.mxu0 0.0
  %1388 = vmatpush1.msra.mxu0 0.0
  %1389 = vmatprep.subr.mxu0 0.0
  %1390 = vmatpush1.msra.mxu0 0.0
  %1391 = vmatprep.subr.mxu0 0.0
  %1392 = vmatpush1.msra.mxu0 0.0
  %1393 = vmatprep.subr.mxu0 0.0
  %1394 = vmatpush1.msra.mxu0 0.0
  %1395 = vmatprep.subr.mxu0 0.0
  %1396 = vmatpush1.msra.mxu0 0.0
  %1397 = vmatprep.subr.mxu0 0.0
  %1398 = vmatpush1.msra.mxu0 0.0
  %1399 = vmatprep.subr.mxu0 0.0
  %1400 = vmatpush1.msra.mxu0 0.0
  %1401 = vmatprep.subr.mxu0 0.0
  %1402 = vmatpush1.msra.mxu0 0.0
  %1403 = vmatprep.subr.mxu0 0.0
  %1404 = vmatpush1.msra.mxu0 0.0
  %1405 = vmatprep.subr.mxu0 0.0
  %1406 = vmatpush1.msra.mxu0 0.0
  %1407 = vmatprep.subr.mxu0 0.0
  %1408 = vmatpush1.msra.mxu0 0.0
  %1409 = vmatprep.subr.mxu0 0.0
  %1410 = vmatpush1.msra.mxu0 0.0
  %1411 = vmatprep.subr.mxu0 0.0
  %1412 = vmatpush1.msra.mxu0 0.0
  %1413 = vmatprep.subr.mxu0 0.0
  %1414 = vmatpush1.msra.mxu0 0.0
  %1415 = vmatprep.subr.mxu0 0.0
  %1416 = vmatpush1.msra.mxu0 0.0
  %1417 = vmatprep.subr.mxu0 0.0
  %1418 = vmatpush1.msra.mxu0 0.0
  %1419 = vmatprep.subr.mxu0 0.0
  %1420 = vmatpush1.msra.mxu0 0.0
  %1421 = vmatprep.subr.mxu0 0.0
  %1422 = vmatpush1.msra.mxu0 0.0
  %1423 = vmatprep.subr.mxu0 0.0
  %1424 = vmatpush1.msra.mxu0 0.0
  %1425 = vmatprep.subr.mxu0 0.0
  %1426 = vmatpush1.msra.mxu0 0.0
  %1427 = vmatprep.subr.mxu0 0.0
  %1428 = vmatpush1.msra.mxu0 0.0
  %1429 = vmatprep.subr.mxu0 0.0
  %1430 = vmatpush1.msra.mxu0 0.0
  %1431 = vmatprep.subr.mxu0 0.0
  %1432 = vmatpush1.msra.mxu0 0.0
  %1433 = vmatprep.mubr.f32.mxu0 0.0
  %1434 = vmatmul.mubr.f32.gmra.mrb[0].mxu0 %v1367
  %v1435 = vpop.f32.mrb[0].mxu0
  %v1436 = vadd.f32 0.0, %v1435
  %v1437 = vpop.f32.mrb[0].mxu0
  %1438 = vdwg.mxu0
  %v1440 = vrot.slane %v1436, 6
  %v1442 = vadd.f32 %v1246, %v1440
  %v1443 = vxor.u32 %v1442, 2147483648
  %v1444 = vmul.f32 %v1443, 1.442695
  %v1445 = vpow.pop %v1444
  %v1446 = vadd.f32 %v1445, 1.0
  %v1447 = vrcp.pop %v1446
  %v1448 = vmul.f32 1.0, %v1447
  %v1449 = vadd.f32 %v1436, %v1342
  %v1451 = vrot.slane %v1449, 6
  %1452 = vrot.lane.b32.xlu0 %v1451, 64
  %v1453 = vpop.permute.xlu0 %1452
  %v1455 = vmul.f32 %v1448, %v1453
  %1457 = vrot.lane.b32.xlu0 %v1455, 64
  %v1458 = vpop.permute.xlu0 %1457
  %v1460 = vadd.f32 %v1246, %v1458
  %v1461 = vtanh.pop %v1460
  %v1462 = vsub.f32 1.0, %v1448
  %1464 = vrot.lane.b32.xlu0 %v1461, 96
  %v1465 = vpop.permute.xlu0 %1464
  %v1467 = vmul.f32 %v1462, %v1465
  %v1468 = vrot.slane %v1363, 6
  %v1470 = vmul.f32 %v1448, %v1468
  %v1471 = vadd.f32 %v1467, %v1470
  %v1473 = vrot.slane %v1471, 2
  %1474 = vrot.lane.b32.xlu0 %v1473, 96
  %v1475 = vpop.permute.xlu0 %1474
  %v1476 = vsel %vm267, %v1475, 0
  %1478 = vmatprep.subr.mxu0 0.0
  %1479 = vmatpush1.msra.mxu0 %v1254
  %1480 = vmatprep.subr.mxu0 0.0
  %1481 = vmatpush1.msra.mxu0 %v1255
  %1482 = vmatprep.subr.mxu0 0.0
  %1483 = vmatpush1.msra.mxu0 %v1256
  %1484 = vmatprep.subr.mxu0 0.0
  %1485 = vmatpush1.msra.mxu0 %v1257
  %1486 = vmatprep.subr.mxu0 0.0
  %1487 = vmatpush1.msra.mxu0 0.0
  %1488 = vmatprep.subr.mxu0 0.0
  %1489 = vmatpush1.msra.mxu0 0.0
  %1490 = vmatprep.subr.mxu0 0.0
  %1491 = vmatpush1.msra.mxu0 0.0
  %1492 = vmatprep.subr.mxu0 0.0
  %1493 = vmatpush1.msra.mxu0 0.0
  %1494 = vmatprep.subr.mxu0 0.0
  %1495 = vmatpush1.msra.mxu0 0.0
  %1496 = vmatprep.subr.mxu0 0.0
  %1497 = vmatpush1.msra.mxu0 0.0
  %1498 = vmatprep.subr.mxu0 0.0
  %1499 = vmatpush1.msra.mxu0 0.0
  %1500 = vmatprep.subr.mxu0 0.0
  %1501 = vmatpush1.msra.mxu0 0.0
  %1502 = vmatprep.subr.mxu0 0.0
  %1503 = vmatpush1.msra.mxu0 0.0
  %1504 = vmatprep.subr.mxu0 0.0
  %1505 = vmatpush1.msra.mxu0 0.0
  %1506 = vmatprep.subr.mxu0 0.0
  %1507 = vmatpush1.msra.mxu0 0.0
  %1508 = vmatprep.subr.mxu0 0.0
  %1509 = vmatpush1.msra.mxu0 0.0
  %1510 = vmatprep.subr.mxu0 0.0
  %1511 = vmatpush1.msra.mxu0 0.0
  %1512 = vmatprep.subr.mxu0 0.0
  %1513 = vmatpush1.msra.mxu0 0.0
  %1514 = vmatprep.subr.mxu0 0.0
  %1515 = vmatpush1.msra.mxu0 0.0
  %1516 = vmatprep.subr.mxu0 0.0
  %1517 = vmatpush1.msra.mxu0 0.0
  %1518 = vmatprep.subr.mxu0 0.0
  %1519 = vmatpush1.msra.mxu0 0.0
  %1520 = vmatprep.subr.mxu0 0.0
  %1521 = vmatpush1.msra.mxu0 0.0
  %1522 = vmatprep.subr.mxu0 0.0
  %1523 = vmatpush1.msra.mxu0 0.0
  %1524 = vmatprep.subr.mxu0 0.0
  %1525 = vmatpush1.msra.mxu0 0.0
  %1526 = vmatprep.subr.mxu0 0.0
  %1527 = vmatpush1.msra.mxu0 0.0
  %1528 = vmatprep.subr.mxu0 0.0
  %1529 = vmatpush1.msra.mxu0 0.0
  %1530 = vmatprep.subr.mxu0 0.0
  %1531 = vmatpush1.msra.mxu0 0.0
  %1532 = vmatprep.subr.mxu0 0.0
  %1533 = vmatpush1.msra.mxu0 0.0
  %1534 = vmatprep.subr.mxu0 0.0
  %1535 = vmatpush1.msra.mxu0 0.0
  %1536 = vmatprep.subr.mxu0 0.0
  %1537 = vmatpush1.msra.mxu0 0.0
  %1538 = vmatprep.subr.mxu0 0.0
  %1539 = vmatpush1.msra.mxu0 0.0
  %1540 = vmatprep.subr.mxu0 0.0
  %1541 = vmatpush1.msra.mxu0 0.0
  %1542 = vmatprep.mubr.f32.mxu0 0.0
  %1543 = vmatmul.mubr.f32.gmra.mrb[0].mxu0 %v1476
  %v1544 = vpop.f32.mrb[0].mxu0
  %v1545 = vadd.f32 0.0, %v1544
  %v1546 = vpop.f32.mrb[0].mxu0
  %1547 = vdwg.mxu0
  %v1549 = vrot.slane %v1545, 4
  %v1551 = vadd.f32 %v1246, %v1549
  %v1552 = vxor.u32 %v1551, 2147483648
  %v1553 = vmul.f32 %v1552, 1.442695
  %v1554 = vpow.pop %v1553
  %v1555 = vadd.f32 %v1554, 1.0
  %v1556 = vrcp.pop %v1555
  %v1557 = vmul.f32 1.0, %v1556
  %v1558 = vadd.f32 %v1545, %v1342
  %v1560 = vrot.slane %v1558, 4
  %1561 = vrot.lane.b32.xlu0 %v1560, 64
  %v1562 = vpop.permute.xlu0 %1561
  %v1564 = vmul.f32 %v1557, %v1562
  %1566 = vrot.lane.b32.xlu0 %v1564, 64
  %v1567 = vpop.permute.xlu0 %1566
  %v1569 = vadd.f32 %v1246, %v1567
  %v1570 = vtanh.pop %v1569
  %v1571 = vsub.f32 1.0, %v1557
  %1573 = vrot.lane.b32.xlu0 %v1570, 96
  %v1574 = vpop.permute.xlu0 %1573
  %v1576 = vmul.f32 %v1571, %v1574
  %v1577 = vrot.slane %v1471, 6
  %v1579 = vmul.f32 %v1557, %v1577
  %v1580 = vadd.f32 %v1576, %v1579
  %v1582 = vrot.slane %v1580, 4
  %1583 = vrot.lane.b32.xlu0 %v1582, 96
  %v1584 = vpop.permute.xlu0 %1583
  %v1585 = vsel %vm267, %v1584, 0
  %1587 = vmatprep.subr.mxu0 0.0
  %1588 = vmatpush1.msra.mxu0 %v1254
  %1589 = vmatprep.subr.mxu0 0.0
  %1590 = vmatpush1.msra.mxu0 %v1255
  %1591 = vmatprep.subr.mxu0 0.0
  %1592 = vmatpush1.msra.mxu0 %v1256
  %1593 = vmatprep.subr.mxu0 0.0
  %1594 = vmatpush1.msra.mxu0 %v1257
  %1595 = vmatprep.subr.mxu0 0.0
  %1596 = vmatpush1.msra.mxu0 0.0
  %1597 = vmatprep.subr.mxu0 0.0
  %1598 = vmatpush1.msra.mxu0 0.0
  %1599 = vmatprep.subr.mxu0 0.0
  %1600 = vmatpush1.msra.mxu0 0.0
  %1601 = vmatprep.subr.mxu0 0.0
  %1602 = vmatpush1.msra.mxu0 0.0
  %1603 = vmatprep.subr.mxu0 0.0
  %1604 = vmatpush1.msra.mxu0 0.0
  %1605 = vmatprep.subr.mxu0 0.0
  %1606 = vmatpush1.msra.mxu0 0.0
  %1607 = vmatprep.subr.mxu0 0.0
  %1608 = vmatpush1.msra.mxu0 0.0
  %1609 = vmatprep.subr.mxu0 0.0
  %1610 = vmatpush1.msra.mxu0 0.0
  %1611 = vmatprep.subr.mxu0 0.0
  %1612 = vmatpush1.msra.mxu0 0.0
  %1613 = vmatprep.subr.mxu0 0.0
  %1614 = vmatpush1.msra.mxu0 0.0
  %1615 = vmatprep.subr.mxu0 0.0
  %1616 = vmatpush1.msra.mxu0 0.0
  %1617 = vmatprep.subr.mxu0 0.0
  %1618 = vmatpush1.msra.mxu0 0.0
  %1619 = vmatprep.subr.mxu0 0.0
  %1620 = vmatpush1.msra.mxu0 0.0
  %1621 = vmatprep.subr.mxu0 0.0
  %1622 = vmatpush1.msra.mxu0 0.0
  %1623 = vmatprep.subr.mxu0 0.0
  %1624 = vmatpush1.msra.mxu0 0.0
  %1625 = vmatprep.subr.mxu0 0.0
  %1626 = vmatpush1.msra.mxu0 0.0
  %1627 = vmatprep.subr.mxu0 0.0
  %1628 = vmatpush1.msra.mxu0 0.0
  %1629 = vmatprep.subr.mxu0 0.0
  %1630 = vmatpush1.msra.mxu0 0.0
  %1631 = vmatprep.subr.mxu0 0.0
  %1632 = vmatpush1.msra.mxu0 0.0
  %1633 = vmatprep.subr.mxu0 0.0
  %1634 = vmatpush1.msra.mxu0 0.0
  %1635 = vmatprep.subr.mxu0 0.0
  %1636 = vmatpush1.msra.mxu0 0.0
  %1637 = vmatprep.subr.mxu0 0.0
  %1638 = vmatpush1.msra.mxu0 0.0
  %1639 = vmatprep.subr.mxu0 0.0
  %1640 = vmatpush1.msra.mxu0 0.0
  %1641 = vmatprep.subr.mxu0 0.0
  %1642 = vmatpush1.msra.mxu0 0.0
  %1643 = vmatprep.subr.mxu0 0.0
  %1644 = vmatpush1.msra.mxu0 0.0
  %1645 = vmatprep.subr.mxu0 0.0
  %1646 = vmatpush1.msra.mxu0 0.0
  %1647 = vmatprep.subr.mxu0 0.0
  %1648 = vmatpush1.msra.mxu0 0.0
  %1649 = vmatprep.subr.mxu0 0.0
  %1650 = vmatpush1.msra.mxu0 0.0
  %1651 = vmatprep.mubr.f32.mxu0 0.0
  %1652 = vmatmul.mubr.f32.gmra.mrb[0].mxu0 %v1585
  %v1653 = vpop.f32.mrb[0].mxu0
  %v1654 = vadd.f32 0.0, %v1653
  %v1655 = vpop.f32.mrb[0].mxu0
  %1656 = vdwg.mxu0
  %v1658 = vrot.slane %v1654, 2
  %v1660 = vadd.f32 %v1246, %v1658
  %v1661 = vxor.u32 %v1660, 2147483648
  %v1662 = vmul.f32 %v1661, 1.442695
  %v1663 = vpow.pop %v1662
  %v1664 = vadd.f32 %v1663, 1.0
  %v1665 = vrcp.pop %v1664
  %v1666 = vmul.f32 1.0, %v1665
  %v1667 = vadd.f32 %v1654, %v1342
  %v1669 = vrot.slane %v1667, 2
  %1670 = vrot.lane.b32.xlu0 %v1669, 64
  %v1671 = vpop.permute.xlu0 %1670
  %v1673 = vmul.f32 %v1666, %v1671
  %1675 = vrot.lane.b32.xlu0 %v1673, 64
  %v1676 = vpop.permute.xlu0 %1675
  %v1678 = vadd.f32 %v1246, %v1676
  %v1679 = vtanh.pop %v1678
  %v1680 = vsub.f32 1.0, %v1666
  %1682 = vrot.lane.b32.xlu0 %v1679, 96
  %v1683 = vpop.permute.xlu0 %1682
  %v1685 = vmul.f32 %v1680, %v1683
  %v1686 = vrot.slane %v1580, 6
  %v1688 = vmul.f32 %v1666, %v1686
  %v1689 = vadd.f32 %v1685, %v1688
  %v1691 = vrot.slane %v1689, 6
  %1692 = vrot.lane.b32.xlu0 %v1691, 96
  %v1693 = vpop.permute.xlu0 %1692
  %v1694 = vsel %vm267, %v1693, 0
  %1696 = vmatprep.subr.mxu0 0.0
  %1697 = vmatpush1.msra.mxu0 %v1254
  %1698 = vmatprep.subr.mxu0 0.0
  %1699 = vmatpush1.msra.mxu0 %v1255
  %1700 = vmatprep.subr.mxu0 0.0
  %1701 = vmatpush1.msra.mxu0 %v1256
  %1702 = vmatprep.subr.mxu0 0.0
  %1703 = vmatpush1.msra.mxu0 %v1257
  %1704 = vmatprep.subr.mxu0 0.0
  %1705 = vmatpush1.msra.mxu0 0.0
  %1706 = vmatprep.subr.mxu0 0.0
  %1707 = vmatpush1.msra.mxu0 0.0
  %1708 = vmatprep.subr.mxu0 0.0
  %1709 = vmatpush1.msra.mxu0 0.0
  %1710 = vmatprep.subr.mxu0 0.0
  %1711 = vmatpush1.msra.mxu0 0.0
  %1712 = vmatprep.subr.mxu0 0.0
  %1713 = vmatpush1.msra.mxu0 0.0
  %1714 = vmatprep.subr.mxu0 0.0
  %1715 = vmatpush1.msra.mxu0 0.0
  %1716 = vmatprep.subr.mxu0 0.0
  %1717 = vmatpush1.msra.mxu0 0.0
  %1718 = vmatprep.subr.mxu0 0.0
  %1719 = vmatpush1.msra.mxu0 0.0
  %1720 = vmatprep.subr.mxu0 0.0
  %1721 = vmatpush1.msra.mxu0 0.0
  %1722 = vmatprep.subr.mxu0 0.0
  %1723 = vmatpush1.msra.mxu0 0.0
  %1724 = vmatprep.subr.mxu0 0.0
  %1725 = vmatpush1.msra.mxu0 0.0
  %1726 = vmatprep.subr.mxu0 0.0
  %1727 = vmatpush1.msra.mxu0 0.0
  %1728 = vmatprep.subr.mxu0 0.0
  %1729 = vmatpush1.msra.mxu0 0.0
  %1730 = vmatprep.subr.mxu0 0.0
  %1731 = vmatpush1.msra.mxu0 0.0
  %1732 = vmatprep.subr.mxu0 0.0
  %1733 = vmatpush1.msra.mxu0 0.0
  %1734 = vmatprep.subr.mxu0 0.0
  %1735 = vmatpush1.msra.mxu0 0.0
  %1736 = vmatprep.subr.mxu0 0.0
  %1737 = vmatpush1.msra.mxu0 0.0
  %1738 = vmatprep.subr.mxu0 0.0
  %1739 = vmatpush1.msra.mxu0 0.0
  %1740 = vmatprep.subr.mxu0 0.0
  %1741 = vmatpush1.msra.mxu0 0.0
  %1742 = vmatprep.subr.mxu0 0.0
  %1743 = vmatpush1.msra.mxu0 0.0
  %1744 = vmatprep.subr.mxu0 0.0
  %1745 = vmatpush1.msra.mxu0 0.0
  %1746 = vmatprep.subr.mxu0 0.0
  %1747 = vmatpush1.msra.mxu0 0.0
  %1748 = vmatprep.subr.mxu0 0.0
  %1749 = vmatpush1.msra.mxu0 0.0
  %1750 = vmatprep.subr.mxu0 0.0
  %1751 = vmatpush1.msra.mxu0 0.0
  %1752 = vmatprep.subr.mxu0 0.0
  %1753 = vmatpush1.msra.mxu0 0.0
  %1754 = vmatprep.subr.mxu0 0.0
  %1755 = vmatpush1.msra.mxu0 0.0
  %1756 = vmatprep.subr.mxu0 0.0
  %1757 = vmatpush1.msra.mxu0 0.0
  %1758 = vmatprep.subr.mxu0 0.0
  %1759 = vmatpush1.msra.mxu0 0.0
  %1760 = vmatprep.mubr.f32.mxu0 0.0
  %1761 = vmatmul.mubr.f32.gmra.mrb[0].mxu0 %v1694
  %v1762 = vpop.f32.mrb[0].mxu0
  %v1763 = vadd.f32 0.0, %v1762
  %v1764 = vpop.f32.mrb[0].mxu0
  %1765 = vdwg.mxu0
  %v1766 = vadd.f32 %v1251, %v1763
  %v1767 = vxor.u32 %v1766, 2147483648
  %v1768 = vmul.f32 %v1767, 1.442695
  %v1769 = vpow.pop %v1768
  %v1770 = vadd.f32 %v1769, 1.0
  %v1771 = vrcp.pop %v1770
  %v1772 = vmul.f32 1.0, %v1771
  %v1773 = vadd.f32 %v1763, %v1342
  %1775 = vrot.lane.b32.xlu0 %v1773, 64
  %v1776 = vpop.permute.xlu0 %1775
  %v1778 = vmul.f32 %v1772, %v1776
  %1780 = vrot.lane.b32.xlu0 %v1778, 64
  %v1781 = vpop.permute.xlu0 %1780
  %v1783 = vadd.f32 %v1251, %v1781
  %v1784 = vtanh.pop %v1783
  %v1785 = vsub.f32 1.0, %v1772
  %1787 = vrot.lane.b32.xlu0 %v1784, 96
  %v1788 = vpop.permute.xlu0 %1787
  %v1790 = vmul.f32 %v1785, %v1788
  %v1792 = vmul.f32 %v1772, %v1691
  %v1793 = vadd.f32 %v1790, %v1792
  %1795 = vrot.lane.b32.xlu0 %v1793, 96
  %v1796 = vpop.permute.xlu0 %1795
  %v1797 = vsel %vm267, %v1796, 0
  %1799 = vmatprep.subr.mxu0 0.0
  %1800 = vmatpush1.msra.mxu0 %v1254
  %1801 = vmatprep.subr.mxu0 0.0
  %1802 = vmatpush1.msra.mxu0 %v1255
  %1803 = vmatprep.subr.mxu0 0.0
  %1804 = vmatpush1.msra.mxu0 %v1256
  %1805 = vmatprep.subr.mxu0 0.0
  %1806 = vmatpush1.msra.mxu0 %v1257
  %1807 = vmatprep.subr.mxu0 0.0
  %1808 = vmatpush1.msra.mxu0 0.0
  %1809 = vmatprep.subr.mxu0 0.0
  %1810 = vmatpush1.msra.mxu0 0.0
  %1811 = vmatprep.subr.mxu0 0.0
  %1812 = vmatpush1.msra.mxu0 0.0
  %1813 = vmatprep.subr.mxu0 0.0
  %1814 = vmatpush1.msra.mxu0 0.0
  %1815 = vmatprep.subr.mxu0 0.0
  %1816 = vmatpush1.msra.mxu0 0.0
  %1817 = vmatprep.subr.mxu0 0.0
  %1818 = vmatpush1.msra.mxu0 0.0
  %1819 = vmatprep.subr.mxu0 0.0
  %1820 = vmatpush1.msra.mxu0 0.0
  %1821 = vmatprep.subr.mxu0 0.0
  %1822 = vmatpush1.msra.mxu0 0.0
  %1823 = vmatprep.subr.mxu0 0.0
  %1824 = vmatpush1.msra.mxu0 0.0
  %1825 = vmatprep.subr.mxu0 0.0
  %1826 = vmatpush1.msra.mxu0 0.0
  %1827 = vmatprep.subr.mxu0 0.0
  %1828 = vmatpush1.msra.mxu0 0.0
  %1829 = vmatprep.subr.mxu0 0.0
  %1830 = vmatpush1.msra.mxu0 0.0
  %1831 = vmatprep.subr.mxu0 0.0
  %1832 = vmatpush1.msra.mxu0 0.0
  %1833 = vmatprep.subr.mxu0 0.0
  %1834 = vmatpush1.msra.mxu0 0.0
  %1835 = vmatprep.subr.mxu0 0.0
  %1836 = vmatpush1.msra.mxu0 0.0
  %1837 = vmatprep.subr.mxu0 0.0
  %1838 = vmatpush1.msra.mxu0 0.0
  %1839 = vmatprep.subr.mxu0 0.0
  %1840 = vmatpush1.msra.mxu0 0.0
  %1841 = vmatprep.subr.mxu0 0.0
  %1842 = vmatpush1.msra.mxu0 0.0
  %1843 = vmatprep.subr.mxu0 0.0
  %1844 = vmatpush1.msra.mxu0 0.0
  %1845 = vmatprep.subr.mxu0 0.0
  %1846 = vmatpush1.msra.mxu0 0.0
  %1847 = vmatprep.subr.mxu0 0.0
  %1848 = vmatpush1.msra.mxu0 0.0
  %1849 = vmatprep.subr.mxu0 0.0
  %1850 = vmatpush1.msra.mxu0 0.0
  %1851 = vmatprep.subr.mxu0 0.0
  %1852 = vmatpush1.msra.mxu0 0.0
  %1853 = vmatprep.subr.mxu0 0.0
  %1854 = vmatpush1.msra.mxu0 0.0
  %1855 = vmatprep.subr.mxu0 0.0
  %1856 = vmatpush1.msra.mxu0 0.0
  %1857 = vmatprep.subr.mxu0 0.0
  %1858 = vmatpush1.msra.mxu0 0.0
  %1859 = vmatprep.subr.mxu0 0.0
  %1860 = vmatpush1.msra.mxu0 0.0
  %1861 = vmatprep.subr.mxu0 0.0
  %1862 = vmatpush1.msra.mxu0 0.0
  %1863 = vmatprep.mubr.f32.mxu0 0.0
  %1864 = vmatmul.mubr.f32.gmra.mrb[0].mxu0 %v1797
  %v1865 = vpop.f32.mrb[0].mxu0
  %v1866 = vadd.f32 0.0, %v1865
  %v1867 = vpop.f32.mrb[0].mxu0
  %1868 = vdwg.mxu0
  %v1870 = vrot.slane %v1866, 6
  %v1872 = vadd.f32 %v1251, %v1870
  %v1873 = vxor.u32 %v1872, 2147483648
  %v1874 = vmul.f32 %v1873, 1.442695
  %v1875 = vpow.pop %v1874
  %v1876 = vadd.f32 %v1875, 1.0
  %v1877 = vrcp.pop %v1876
  %v1878 = vmul.f32 1.0, %v1877
  %v1879 = vadd.f32 %v1866, %v1342
  %v1881 = vrot.slane %v1879, 6
  %1882 = vrot.lane.b32.xlu0 %v1881, 64
  %v1883 = vpop.permute.xlu0 %1882
  %v1885 = vmul.f32 %v1878, %v1883
  %1887 = vrot.lane.b32.xlu0 %v1885, 64
  %v1888 = vpop.permute.xlu0 %1887
  %v1890 = vadd.f32 %v1251, %v1888
  %v1891 = vtanh.pop %v1890
  %v1892 = vsub.f32 1.0, %v1878
  %1894 = vrot.lane.b32.xlu0 %v1891, 96
  %v1895 = vpop.permute.xlu0 %1894
  %v1897 = vmul.f32 %v1892, %v1895
  %v1898 = vrot.slane %v1793, 6
  %v1900 = vmul.f32 %v1878, %v1898
  %v1901 = vadd.f32 %v1897, %v1900
  %v1903 = vrot.slane %v1901, 2
  %1904 = vrot.lane.b32.xlu0 %v1903, 96
  %v1905 = vpop.permute.xlu0 %1904
  %v1906 = vsel %vm267, %v1905, 0
  %1908 = vmatprep.subr.mxu0 0.0
  %1909 = vmatpush1.msra.mxu0 %v1254
  %1910 = vmatprep.subr.mxu0 0.0
  %1911 = vmatpush1.msra.mxu0 %v1255
  %1912 = vmatprep.subr.mxu0 0.0
  %1913 = vmatpush1.msra.mxu0 %v1256
  %1914 = vmatprep.subr.mxu0 0.0
  %1915 = vmatpush1.msra.mxu0 %v1257
  %1916 = vmatprep.subr.mxu0 0.0
  %1917 = vmatpush1.msra.mxu0 0.0
  %1918 = vmatprep.subr.mxu0 0.0
  %1919 = vmatpush1.msra.mxu0 0.0
  %1920 = vmatprep.subr.mxu0 0.0
  %1921 = vmatpush1.msra.mxu0 0.0
  %1922 = vmatprep.subr.mxu0 0.0
  %1923 = vmatpush1.msra.mxu0 0.0
  %1924 = vmatprep.subr.mxu0 0.0
  %1925 = vmatpush1.msra.mxu0 0.0
  %1926 = vmatprep.subr.mxu0 0.0
  %1927 = vmatpush1.msra.mxu0 0.0
  %1928 = vmatprep.subr.mxu0 0.0
  %1929 = vmatpush1.msra.mxu0 0.0
  %1930 = vmatprep.subr.mxu0 0.0
  %1931 = vmatpush1.msra.mxu0 0.0
  %1932 = vmatprep.subr.mxu0 0.0
  %1933 = vmatpush1.msra.mxu0 0.0
  %1934 = vmatprep.subr.mxu0 0.0
  %1935 = vmatpush1.msra.mxu0 0.0
  %1936 = vmatprep.subr.mxu0 0.0
  %1937 = vmatpush1.msra.mxu0 0.0
  %1938 = vmatprep.subr.mxu0 0.0
  %1939 = vmatpush1.msra.mxu0 0.0
  %1940 = vmatprep.subr.mxu0 0.0
  %1941 = vmatpush1.msra.mxu0 0.0
  %1942 = vmatprep.subr.mxu0 0.0
  %1943 = vmatpush1.msra.mxu0 0.0
  %1944 = vmatprep.subr.mxu0 0.0
  %1945 = vmatpush1.msra.mxu0 0.0
  %1946 = vmatprep.subr.mxu0 0.0
  %1947 = vmatpush1.msra.mxu0 0.0
  %1948 = vmatprep.subr.mxu0 0.0
  %1949 = vmatpush1.msra.mxu0 0.0
  %1950 = vmatprep.subr.mxu0 0.0
  %1951 = vmatpush1.msra.mxu0 0.0
  %1952 = vmatprep.subr.mxu0 0.0
  %1953 = vmatpush1.msra.mxu0 0.0
  %1954 = vmatprep.subr.mxu0 0.0
  %1955 = vmatpush1.msra.mxu0 0.0
  %1956 = vmatprep.subr.mxu0 0.0
  %1957 = vmatpush1.msra.mxu0 0.0
  %1958 = vmatprep.subr.mxu0 0.0
  %1959 = vmatpush1.msra.mxu0 0.0
  %1960 = vmatprep.subr.mxu0 0.0
  %1961 = vmatpush1.msra.mxu0 0.0
  %1962 = vmatprep.subr.mxu0 0.0
  %1963 = vmatpush1.msra.mxu0 0.0
  %1964 = vmatprep.subr.mxu0 0.0
  %1965 = vmatpush1.msra.mxu0 0.0
  %1966 = vmatprep.subr.mxu0 0.0
  %1967 = vmatpush1.msra.mxu0 0.0
  %1968 = vmatprep.subr.mxu0 0.0
  %1969 = vmatpush1.msra.mxu0 0.0
  %1970 = vmatprep.subr.mxu0 0.0
  %1971 = vmatpush1.msra.mxu0 0.0
  %1972 = vmatprep.mubr.f32.mxu0 0.0
  %1973 = vmatmul.mubr.f32.gmra.mrb[0].mxu0 %v1906
  %v1974 = vpop.f32.mrb[0].mxu0
  %v1975 = vadd.f32 0.0, %v1974
  %v1976 = vpop.f32.mrb[0].mxu0
  %1977 = vdwg.mxu0
  %v1979 = vrot.slane %v1975, 4
  %v1981 = vadd.f32 %v1251, %v1979
  %v1982 = vxor.u32 %v1981, 2147483648
  %v1983 = vmul.f32 %v1982, 1.442695
  %v1984 = vpow.pop %v1983
  %v1985 = vadd.f32 %v1984, 1.0
  %v1986 = vrcp.pop %v1985
  %v1987 = vmul.f32 1.0, %v1986
  %v1988 = vadd.f32 %v1975, %v1342
  %v1990 = vrot.slane %v1988, 4
  %1991 = vrot.lane.b32.xlu0 %v1990, 64
  %v1992 = vpop.permute.xlu0 %1991
  %v1994 = vmul.f32 %v1987, %v1992
  %1996 = vrot.lane.b32.xlu0 %v1994, 64
  %v1997 = vpop.permute.xlu0 %1996
  %v1999 = vadd.f32 %v1251, %v1997
  %v2000 = vtanh.pop %v1999
  %v2001 = vsub.f32 1.0, %v1987
  %2003 = vrot.lane.b32.xlu0 %v2000, 96
  %v2004 = vpop.permute.xlu0 %2003
  %v2006 = vmul.f32 %v2001, %v2004
  %v2007 = vrot.slane %v1901, 6
  %v2009 = vmul.f32 %v1987, %v2007
  %v2010 = vadd.f32 %v2006, %v2009
  %v2012 = vrot.slane %v2010, 4
  %2013 = vrot.lane.b32.xlu0 %v2012, 96
  %v2014 = vpop.permute.xlu0 %2013
  %v2015 = vsel %vm267, %v2014, 0
  %2017 = vmatprep.subr.mxu0 0.0
  %2018 = vmatpush1.msra.mxu0 %v1254
  %2019 = vmatprep.subr.mxu0 0.0
  %2020 = vmatpush1.msra.mxu0 %v1255
  %2021 = vmatprep.subr.mxu0 0.0
  %2022 = vmatpush1.msra.mxu0 %v1256
  %2023 = vmatprep.subr.mxu0 0.0
  %2024 = vmatpush1.msra.mxu0 %v1257
  %2025 = vmatprep.subr.mxu0 0.0
  %2026 = vmatpush1.msra.mxu0 0.0
  %2027 = vmatprep.subr.mxu0 0.0
  %2028 = vmatpush1.msra.mxu0 0.0
  %2029 = vmatprep.subr.mxu0 0.0
  %2030 = vmatpush1.msra.mxu0 0.0
  %2031 = vmatprep.subr.mxu0 0.0
  %2032 = vmatpush1.msra.mxu0 0.0
  %2033 = vmatprep.subr.mxu0 0.0
  %2034 = vmatpush1.msra.mxu0 0.0
  %2035 = vmatprep.subr.mxu0 0.0
  %2036 = vmatpush1.msra.mxu0 0.0
  %2037 = vmatprep.subr.mxu0 0.0
  %2038 = vmatpush1.msra.mxu0 0.0
  %2039 = vmatprep.subr.mxu0 0.0
  %2040 = vmatpush1.msra.mxu0 0.0
  %2041 = vmatprep.subr.mxu0 0.0
  %2042 = vmatpush1.msra.mxu0 0.0
  %2043 = vmatprep.subr.mxu0 0.0
  %2044 = vmatpush1.msra.mxu0 0.0
  %2045 = vmatprep.subr.mxu0 0.0
  %2046 = vmatpush1.msra.mxu0 0.0
  %2047 = vmatprep.subr.mxu0 0.0
  %2048 = vmatpush1.msra.mxu0 0.0
  %2049 = vmatprep.subr.mxu0 0.0
  %2050 = vmatpush1.msra.mxu0 0.0
  %2051 = vmatprep.subr.mxu0 0.0
  %2052 = vmatpush1.msra.mxu0 0.0
  %2053 = vmatprep.subr.mxu0 0.0
  %2054 = vmatpush1.msra.mxu0 0.0
  %2055 = vmatprep.subr.mxu0 0.0
  %2056 = vmatpush1.msra.mxu0 0.0
  %2057 = vmatprep.subr.mxu0 0.0
  %2058 = vmatpush1.msra.mxu0 0.0
  %2059 = vmatprep.subr.mxu0 0.0
  %2060 = vmatpush1.msra.mxu0 0.0
  %2061 = vmatprep.subr.mxu0 0.0
  %2062 = vmatpush1.msra.mxu0 0.0
  %2063 = vmatprep.subr.mxu0 0.0
  %2064 = vmatpush1.msra.mxu0 0.0
  %2065 = vmatprep.subr.mxu0 0.0
  %2066 = vmatpush1.msra.mxu0 0.0
  %2067 = vmatprep.subr.mxu0 0.0
  %2068 = vmatpush1.msra.mxu0 0.0
  %2069 = vmatprep.subr.mxu0 0.0
  %2070 = vmatpush1.msra.mxu0 0.0
  %2071 = vmatprep.subr.mxu0 0.0
  %2072 = vmatpush1.msra.mxu0 0.0
  %2073 = vmatprep.subr.mxu0 0.0
  %2074 = vmatpush1.msra.mxu0 0.0
  %2075 = vmatprep.subr.mxu0 0.0
  %2076 = vmatpush1.msra.mxu0 0.0
  %2077 = vmatprep.subr.mxu0 0.0
  %2078 = vmatpush1.msra.mxu0 0.0
  %2079 = vmatprep.subr.mxu0 0.0
  %2080 = vmatpush1.msra.mxu0 0.0
  %2081 = vmatprep.mubr.f32.mxu0 0.0
  %2082 = vmatmul.mubr.f32.gmra.mrb[0].mxu0 %v2015
  %v2083 = vpop.f32.mrb[0].mxu0
  %v2084 = vadd.f32 0.0, %v2083
  %v2085 = vpop.f32.mrb[0].mxu0
  %2086 = vdwg.mxu0
  %v2088 = vrot.slane %v2084, 2
  %v2090 = vadd.f32 %v1251, %v2088
  %v2091 = vxor.u32 %v2090, 2147483648
  %v2092 = vmul.f32 %v2091, 1.442695
  %v2093 = vpow.pop %v2092
  %v2094 = vadd.f32 %v2093, 1.0
  %v2095 = vrcp.pop %v2094
  %v2096 = vmul.f32 1.0, %v2095
  %v2097 = vadd.f32 %v2084, %v1342
  %v2099 = vrot.slane %v2097, 2
  %2100 = vrot.lane.b32.xlu0 %v2099, 64
  %v2101 = vpop.permute.xlu0 %2100
  %v2103 = vmul.f32 %v2096, %v2101
  %2105 = vrot.lane.b32.xlu0 %v2103, 64
  %v2106 = vpop.permute.xlu0 %2105
  %v2108 = vadd.f32 %v1251, %v2106
  %v2109 = vtanh.pop %v2108
  %v2110 = vsub.f32 1.0, %v2096
  %2112 = vrot.lane.b32.xlu0 %v2109, 96
  %v2113 = vpop.permute.xlu0 %2112
  %v2115 = vmul.f32 %v2110, %v2113
  %v2116 = vrot.slane %v2010, 6
  %v2118 = vmul.f32 %v2096, %v2116
  %v2119 = vadd.f32 %v2115, %v2118
  %v2121 = vrot.slane %v2119, 6
  %vm2123 = vcmask 517376
  %v2124 = vsel %vm2123, %v2121, 0.0
  %v2125 = vrot.slane %v2124, 4
  %v2126 = vadd.f32 %v2124, %v2125
  %v2127 = vrot.slane %v2126, 2
  %v2128 = vadd.f32 %v2126, %v2127
  %v2129 = vrot.slane %v2128, 1
  %v2130 = vadd.f32 %v2128, %v2129
  %v2131 = vrcp.pop 2.0
  %v2132 = vmul.f32 %v2130, %v2131
  %v2133 = vsub.f32 %v2119, %v2132
  %v2134 = vmul.f32 %v2133, %v2133
  %v2136 = vrot.slane %v2134, 6
  %v2138 = vsel %vm2123, %v2136, 0.0
  %v2139 = vrot.slane %v2138, 4
  %v2140 = vadd.f32 %v2138, %v2139
  %v2141 = vrot.slane %v2140, 2
  %v2142 = vadd.f32 %v2140, %v2141
  %v2143 = vrot.slane %v2142, 1
  %v2144 = vadd.f32 %v2142, %v2143
  %v2145 = vmul.f32 %v2144, %v2131
  %v2146 = vadd.f32 %v2145, 1e-05
  %v2147 = vrsqrt.pop %v2146
  %v2148 = vmul.f32 %v2133, %v2147
  %v2149 = vld [vmem:[%s9] sm:$0x1]
  %v2151 = vlaneseq
  %v2152 = vshrl.u32 %v2151, 7
  %v2153 = vsub.s32 0, %v2152
  %v2154 = vrot.slane %v2149, %v2153
  %2155 = vrot.lane.b32.xlu0 %v2154, 32
  %v2156 = vpop.permute.xlu0 %2155
  %v2158 = vmul.f32 %v2148, %v2156
  %v2159 = vld [vmem:[%s10] sm:$0x1]
  %v2161 = vlaneseq
  %v2162 = vshrl.u32 %v2161, 7
  %v2163 = vsub.s32 0, %v2162
  %v2164 = vrot.slane %v2159, %v2163
  %2165 = vrot.lane.b32.xlu0 %v2164, 32
  %v2166 = vpop.permute.xlu0 %2165
  %v2168 = vadd.f32 %v2158, %v2166
  %v2169 = vmax.f32 %v2168, 0.0
  %v2170 = vld [vmem:[%s11] sm:$0xff]
  %v2171 = vld [vmem:[%s11 + $0x8] sm:$0xff]
  %v2172 = vld [vmem:[%s11 + $0x10] sm:$0xff]
  %v2173 = vld [vmem:[%s11 + $0x18] sm:$0xff]
  %v2174 = vld [vmem:[%s12] sm:$0x1]
  %v2176 = vlaneseq
  %v2177 = vshrl.u32 %v2176, 7
  %v2178 = vsub.s32 0, %v2177
  %v2179 = vrot.slane %v2174, %v2178
  %v2182 = vrot.slane %v2169, 6
  %2183 = vrot.lane.b32.xlu0 %v2182, 96
  %v2184 = vpop.permute.xlu0 %2183
  %v2185 = vsel %vm267, %v2184, 0
  %2187 = vmatprep.subr.mxu0 0.0
  %2188 = vmatpush1.msra.mxu0 %v2170
  %2189 = vmatprep.subr.mxu0 0.0
  %2190 = vmatpush1.msra.mxu0 %v2171
  %2191 = vmatprep.subr.mxu0 0.0
  %2192 = vmatpush1.msra.mxu0 %v2172
  %2193 = vmatprep.subr.mxu0 0.0
  %2194 = vmatpush1.msra.mxu0 %v2173
  %2195 = vmatprep.subr.mxu0 0.0
  %2196 = vmatpush1.msra.mxu0 0.0
  %2197 = vmatprep.subr.mxu0 0.0
  %2198 = vmatpush1.msra.mxu0 0.0
  %2199 = vmatprep.subr.mxu0 0.0
  %2200 = vmatpush1.msra.mxu0 0.0
  %2201 = vmatprep.subr.mxu0 0.0
  %2202 = vmatpush1.msra.mxu0 0.0
  %2203 = vmatprep.subr.mxu0 0.0
  %2204 = vmatpush1.msra.mxu0 0.0
  %2205 = vmatprep.subr.mxu0 0.0
  %2206 = vmatpush1.msra.mxu0 0.0
  %2207 = vmatprep.subr.mxu0 0.0
  %2208 = vmatpush1.msra.mxu0 0.0
  %2209 = vmatprep.subr.mxu0 0.0
  %2210 = vmatpush1.msra.mxu0 0.0
  %2211 = vmatprep.subr.mxu0 0.0
  %2212 = vmatpush1.msra.mxu0 0.0
  %2213 = vmatprep.subr.mxu0 0.0
  %2214 = vmatpush1.msra.mxu0 0.0
  %2215 = vmatprep.subr.mxu0 0.0
  %2216 = vmatpush1.msra.mxu0 0.0
  %2217 = vmatprep.subr.mxu0 0.0
  %2218 = vmatpush1.msra.mxu0 0.0
  %2219 = vmatprep.subr.mxu0 0.0
  %2220 = vmatpush1.msra.mxu0 0.0
  %2221 = vmatprep.subr.mxu0 0.0
  %2222 = vmatpush1.msra.mxu0 0.0
  %2223 = vmatprep.subr.mxu0 0.0
  %2224 = vmatpush1.msra.mxu0 0.0
  %2225 = vmatprep.subr.mxu0 0.0
  %2226 = vmatpush1.msra.mxu0 0.0
  %2227 = vmatprep.subr.mxu0 0.0
  %2228 = vmatpush1.msra.mxu0 0.0
  %2229 = vmatprep.subr.mxu0 0.0
  %2230 = vmatpush1.msra.mxu0 0.0
  %2231 = vmatprep.subr.mxu0 0.0
  %2232 = vmatpush1.msra.mxu0 0.0
  %2233 = vmatprep.subr.mxu0 0.0
  %2234 = vmatpush1.msra.mxu0 0.0
  %2235 = vmatprep.subr.mxu0 0.0
  %2236 = vmatpush1.msra.mxu0 0.0
  %2237 = vmatprep.subr.mxu0 0.0
  %2238 = vmatpush1.msra.mxu0 0.0
  %2239 = vmatprep.subr.mxu0 0.0
  %2240 = vmatpush1.msra.mxu0 0.0
  %2241 = vmatprep.subr.mxu0 0.0
  %2242 = vmatpush1.msra.mxu0 0.0
  %2243 = vmatprep.subr.mxu0 0.0
  %2244 = vmatpush1.msra.mxu0 0.0
  %2245 = vmatprep.subr.mxu0 0.0
  %2246 = vmatpush1.msra.mxu0 0.0
  %2247 = vmatprep.subr.mxu0 0.0
  %2248 = vmatpush1.msra.mxu0 0.0
  %2249 = vmatprep.subr.mxu0 0.0
  %2250 = vmatpush1.msra.mxu0 0.0
  %2251 = vmatprep.mubr.f32.mxu0 0.0
  %2252 = vmatmul.mubr.f32.gmra.mrb[0].mxu0 %v2185
  %v2253 = vpop.f32.mrb[0].mxu0
  %v2254 = vadd.f32 %v2179, %v2253
  %v2255 = vpop.f32.mrb[0].mxu0
  %2256 = vdwg.mxu0
  %vm2257 = vcmask 17408
  %2258 = vst.msk [vmem:[%s13] sm:$0x3] %vm2257, %v2254
  // Predicated region
  $region54: #{rnn_forward.1} parent=0 // pred_check
    _
  $region55: #{rnn_forward.1} parent=0 // pred_check_branch
    %2260 = sbr.rel (0) target = $region57
  $region56: #{rnn_forward.1} parent=0 // pred_region
    _
  $region57: #{rnn_forward.1} parent=0 // pred_fallthru
    _
  // Predicated region
  $region58: #{rnn_forward.1} parent=0 // pred_check
    _
  $region59: #{rnn_forward.1} parent=0 // pred_check_branch
    %2262 = sbr.rel (0) target = $region61
  $region60: #{rnn_forward.1} parent=0 // pred_region
    _
  $region61: #{rnn_forward.1} parent=0 // pred_fallthru
    _

</llo_original>
